<compile_context>
chip_gen: v7x
topology: tpu7x:2x2x1
jax: 0.10.0
libtpu: 0.0.40
codegen_flags: <defaults>
</compile_context>

<pallas_src>
import functools

import jax
import jax.numpy as jnp
from jax.experimental import pallas as pl
from jax.experimental.pallas import tpu as pltpu


def _round_up(x: int, m: int) -> int:
    return ((x + m - 1) // m) * m


def _stages_kernel(x_ref, w_ref, b_ref, o_ref, *, d: int, mxu_dtype, acc_dtype,
                   precision):
    """Apply the shared residual 1x1-conv block `d` times to one (C, tile_s) tile.

    Layout: channels on the sublane/contraction axis, spatial on the lane axis,
    so the conv is `W_scaled @ X` and every load/store is lane-dense.
    """
    acc_dtype = jnp.dtype(acc_dtype)
    mxu_dtype = jnp.dtype(mxu_dtype)

    h = x_ref[0].astype(acc_dtype)        # (C, tile_s) residual accumulator
    w = w_ref[...]                        # (C, C) BN-scale-folded weight (mxu_dtype)
    # Hoist the (C,1)->(C,tile_s) bias broadcast out of the stage loop
    # (JAX does not CSE broadcast_in_dim; d copies would land on the VPU).
    bias = jnp.broadcast_to(b_ref[...].astype(acc_dtype), h.shape)

    need_operand_cast = acc_dtype != mxu_dtype

    def stage(hh):
        lhs = hh.astype(mxu_dtype) if need_operand_cast else hh
        # MXU accumulates in f32; cast once to acc_dtype for the epilogue.
        y = jnp.dot(w, lhs, preferred_element_type=jnp.float32,
                    precision=precision)
        if y.dtype != acc_dtype:
            y = y.astype(acc_dtype)
        return jnp.maximum(y + bias, 0.0) + hh     # BN bias + ReLU + residual

    if d <= 4:
        # Short chains: full unroll is fine and gives the scheduler visibility.
        for _ in range(d):
            h = stage(h)
    else:
        # Long chains: partial unroll (4) inside a fori_loop bounds vreg live
        # ranges / code size instead of a full static Python unroll.
        unroll = 4
        n_major = d // unroll

        def body(_, hh):
            for _ in range(unroll):
                hh = stage(hh)
            return hh

        h = jax.lax.fori_loop(0, n_major, body, h)
        for _ in range(d - n_major * unroll):
            h = stage(h)

    o_ref[0] = h.astype(o_ref.dtype)


def _vmem_plan(S: int, C: int, *, x_bytes: int, out_bytes: int, w_bytes: int,
               acc_bytes: int, mxu_bytes: int, x_buffers: int = 2,
               budget_bytes: int = 28 << 20, max_tile_s: int = 32 * 1024):
    """Pick the largest lane-aligned spatial tile whose TRUE VMEM footprint
    (pipelined HBM tiles + in-kernel temporaries + weight buffers) fits the
    budget, plus the scoped-VMEM limit to request.

    The limit is >= 32 MiB (so large tiles don't trip v5e's 16 MiB default)
    and <= 48 MiB (headroom against v7x's 64 MiB physical VMEM).
    """
    # Fixed cost: pipelined (C,C) weight + (C,1) bias (padded to (8,128) tiles).
    fixed = 2 * C * C * w_bytes + 2 * _round_up(C, 8) * 128 * 4
    # Per-spatial-element cost: pipelined x tile(s) + out tile, plus in-kernel
    # temporaries: h (acc), broadcast bias (acc), y (f32 matmul result), and an
    # mxu-dtype operand copy of h when the operand dtype differs from acc.
    per = C * (x_buffers * x_bytes + 2 * out_bytes
               + 2 * acc_bytes + 4
               + (mxu_bytes if mxu_bytes != acc_bytes else 0))
    cap = max(256, (budget_bytes - fixed) // max(1, per))
    tile_s = int(min(S, max_tile_s, cap))
    if tile_s < S:
        # 256-aligned: matches the 2x256^2 MXU on v6e/v7x, still 128-aligned
        # for v5e, and keeps every DMA / store unmasked and lane-dense.
        tile_s = max(256, (tile_s // 256) * 256)
    footprint = fixed + per * tile_s
    vmem_limit = int(min(48 << 20, max(32 << 20, footprint + (6 << 20))))
    return tile_s, vmem_limit


def stages_forward(x_nchw, weight, bn_gamma, bn_beta, bn_mean, bn_var, *,
                   d: int, eps: float = 1e-5,
                   mxu_dtype=jnp.bfloat16, acc_dtype=jnp.float32,
                   precision=None, tile_s: int | None = None,
                   x_buffers: int | None = None, small_s_threshold: int = 256):
    """Run `d` repeats of the shared block on an NCHW input.

    Output dtype == input dtype, so passing a bf16 `x_nchw` gives bf16 HBM I/O
    (halves traffic for this memory-bound kernel).  `acc_dtype=jnp.bfloat16`
    additionally keeps the in-kernel residual chain in bf16 (v6e/v7x VALU win).
    """
    N, C, H, W = x_nchw.shape
    S = H * W

    # Fold eval-mode BatchNorm into the conv:  BN(W x) = (scale * W) x + bias
    inv_std = jax.lax.rsqrt(bn_var.astype(jnp.float32) + eps)
    scale = bn_gamma.astype(jnp.float32) * inv_std                        # (C,)
    bias = (bn_beta.astype(jnp.float32)
            - bn_mean.astype(jnp.float32) * scale).reshape(C, 1)          # (C, 1)
    w_mat = (weight.reshape(C, C).astype(jnp.float32)
             * scale[:, None]).astype(mxu_dtype)                          # (C, C)

    # NCHW -> (N, C, S): free reshape (no transpose).  For tiny spatial
    # extents (late stages, e.g. 7x7) also fold the batch into the lane axis
    # so loads/stores stay lane-dense (one wrapper-side transpose; the kernel
    # still touches every element exactly once).
    x3 = x_nchw.reshape(N, C, S)
    small_s = (S < small_s_threshold) and (N > 1)
    if small_s:
        x3 = x3.transpose(1, 0, 2).reshape(1, C, N * S)
    n_grid, s_eff = x3.shape[0], x3.shape[2]

    bufs = x_buffers if x_buffers is not None else 2
    auto_tile, vmem_limit = _vmem_plan(
        s_eff, C,
        x_bytes=jnp.dtype(x3.dtype).itemsize,
        out_bytes=jnp.dtype(x_nchw.dtype).itemsize,
        w_bytes=jnp.dtype(mxu_dtype).itemsize,
        acc_bytes=jnp.dtype(acc_dtype).itemsize,
        mxu_bytes=jnp.dtype(mxu_dtype).itemsize,
        x_buffers=bufs)
    if tile_s is None:
        tile_s = auto_tile
    # v7x shards "parallel" grid axes across 2 TensorCores: make sure a
    # single-batch call still produces >= 2 grid steps when S allows it.
    if n_grid * (-(-s_eff // tile_s)) < 2 and s_eff >= 512:
        tile_s = max(256, _round_up(-(-s_eff // 2), 256))

    x_spec_kwargs = {}
    if x_buffers is not None and x_buffers != 2:
        # Deeper input pipelining for small-d / mem-bound configs.
        x_spec_kwargs["pipeline_mode"] = pl.Buffered(x_buffers)
    x_spec = pl.BlockSpec((1, C, tile_s), lambda n, s: (n, 0, s),
                          **x_spec_kwargs)

    kernel = functools.partial(_stages_kernel, d=d, mxu_dtype=mxu_dtype,
                               acc_dtype=acc_dtype, precision=precision)

    out3 = pl.pallas_call(
        kernel,
        out_shape=jax.ShapeDtypeStruct(x3.shape, x_nchw.dtype),
        grid_spec=pltpu.PrefetchScalarGridSpec(
            num_scalar_prefetch=0,
            grid=(n_grid, pl.cdiv(s_eff, tile_s)),
            in_specs=[
                x_spec,                                           # x tile
                pl.BlockSpec((C, C), lambda n, s: (0, 0)),        # shared W (BN folded)
                pl.BlockSpec((C, 1), lambda n, s: (0, 0)),        # folded BN bias
            ],
            out_specs=pl.BlockSpec((1, C, tile_s), lambda n, s: (n, 0, s)),
        ),
        compiler_params=pltpu.CompilerParams(
            dimension_semantics=("parallel", "parallel"),
            vmem_limit_bytes=vmem_limit),
    )(x3, w_mat, bias)

    if small_s:
        out3 = out3.reshape(C, N, S).transpose(1, 0, 2)
    return out3.reshape(N, C, H, W)


def _reference_forward(x_nchw, weight, bn_gamma, bn_beta, bn_mean, bn_var,
                       *, d: int, eps: float = 1e-5):
    """Pure-JAX reference mirroring the PyTorch module (conv -> BN -> ReLU, +res)."""
    N, C, H, W = x_nchw.shape
    w = weight.reshape(C, C).astype(jnp.float32)
    inv_std = 1.0 / jnp.sqrt(bn_var.astype(jnp.float32) + eps)
    scale = bn_gamma.astype(jnp.float32) * inv_std
    bias = bn_beta.astype(jnp.float32) - bn_mean.astype(jnp.float32) * scale
    h = x_nchw.reshape(N, C, H * W).astype(jnp.float32)
    for _ in range(d):
        y = jnp.einsum('oc,ncs->nos', w, h, precision=jax.lax.Precision.HIGHEST)
        y = y * scale[:, None] + bias[:, None]
        h = jnp.maximum(y, 0.0) + h
    return h.reshape(N, C, H, W).astype(jnp.float32)


def _make_params(key, C):
    k_w, k_g, k_b, k_m, k_v = jax.random.split(key, 5)
    weight = jax.random.normal(k_w, (C, C, 1, 1), dtype=jnp.float32) * 0.1
    bn_gamma = 1.0 + 0.1 * jax.random.normal(k_g, (C,), dtype=jnp.float32)
    bn_beta = 0.1 * jax.random.normal(k_b, (C,), dtype=jnp.float32)
    bn_mean = 0.1 * jax.random.normal(k_m, (C,), dtype=jnp.float32)
    bn_var = jnp.abs(jax.random.normal(k_v, (C,), dtype=jnp.float32)) + 0.5
    return weight, bn_gamma, bn_beta, bn_mean, bn_var


if __name__ == "__main__":
    key = jax.random.PRNGKey(0)
    k_x1, k_p1, k_x2, k_p2 = jax.random.split(key, 4)

    # ---- Main shapes: batch=2, channels=32, spatial=16x16, d=3 shared stages.
    N, C, H, W = 2, 32, 16, 16
    d = 3
    x = jax.random.normal(k_x1, (N, C, H, W), dtype=jnp.float32)
    params = _make_params(k_p1, C)
    ref = _reference_forward(x, *params, d=d)

    # 1) Exact-semantics check: f32 MXU operands, HIGHEST precision.
    out_exact = jax.block_until_ready(
        stages_forward(x, *params, d=d, mxu_dtype=jnp.float32,
                       precision=jax.lax.Precision.HIGHEST))
    assert out_exact.shape == (N, C, H, W)
    assert jnp.allclose(out_exact, ref, atol=1e-4, rtol=1e-4), \
        "f32/HIGHEST path mismatch vs reference"

    # 2) Default fast path: bf16 MXU operands, f32 accumulator, f32 HBM I/O.
    out_fast = jax.block_until_ready(stages_forward(x, *params, d=d))
    assert jnp.allclose(out_fast, ref, atol=5e-2, rtol=5e-2), \
        "bf16-MXU path mismatch vs reference"

    # 3) bf16 HBM I/O + bf16 epilogue (halves HBM traffic; mem-bound win).
    out_bf16 = jax.block_until_ready(
        stages_forward(x.astype(jnp.bfloat16), *params, d=d,
                       mxu_dtype=jnp.bfloat16, acc_dtype=jnp.bfloat16))
    assert out_bf16.dtype == jnp.bfloat16
    assert jnp.allclose(out_bf16.astype(jnp.float32), ref, atol=1e-1, rtol=1e-1), \
        "bf16-I/O path mismatch vs reference"

    # 4) Small-spatial regime (S=8x8=64 < 256): batch folded into the lane
    #    axis; d=6 also exercises the partially-unrolled fori_loop path.
    N2, C2, H2, W2, d2 = 4, 64, 8, 8, 6
    x2 = jax.random.normal(k_x2, (N2, C2, H2, W2), dtype=jnp.float32)
    params2 = _make_params(k_p2, C2)
    ref2 = _reference_forward(x2, *params2, d=d2)
    out2 = jax.block_until_ready(
        stages_forward(x2, *params2, d=d2, mxu_dtype=jnp.float32,
                       precision=jax.lax.Precision.HIGHEST))
    assert out2.shape == (N2, C2, H2, W2)
    assert jnp.allclose(out2, ref2, atol=1e-3, rtol=1e-3), \
        "small-spatial path mismatch vs reference"

    # TODO(synk): block_cfg is not specified in the snippet; if the real block
    # is not (1x1 conv + BN + ReLU + residual), the fused stage body must be
    # swapped accordingly.

    print("KERNEL_OK")
</pallas_src>

<mosaic_0001>
module attributes {stable_mosaic.version = 11 : i64} {
  func.func @_stages_kernel(%arg0: i32, %arg1: i32, %arg2: memref<1x32x256xf32, #tpu.memory_space<vmem>>, %arg3: memref<32x32xf32, #tpu.memory_space<vmem>>, %arg4: memref<32x1xf32, #tpu.memory_space<vmem>>, %arg5: memref<1x32x256xf32, #tpu.memory_space<vmem>>) attributes {dimension_semantics = [#tpu.dimension_semantics<parallel>, #tpu.dimension_semantics<parallel>], iteration_bounds = array<i64: 2, 1>, scalar_prefetch = 0 : i64, scratch_operands = 0 : i64, tpu.core_type = #tpu.core_type<tc>, window_params = [{transform_indices = @transform_0, window_bounds = array<i64: 1, 32, 256>}, {pipeline_mode = #tpu.pipeline_mode<synchronous>, transform_indices = @transform_1, window_bounds = array<i64: 32, 32>}, {pipeline_mode = #tpu.pipeline_mode<synchronous>, transform_indices = @transform_2, window_bounds = array<i64: 32, 1>}, {transform_indices = @transform_3, window_bounds = array<i64: 1, 32, 256>}]} {
    %c0 = arith.constant 0 : index
    %c0_0 = arith.constant 0 : index
    %c0_1 = arith.constant 0 : index
    %0 = vector.load %arg2[%c0, %c0_0, %c0_1] : memref<1x32x256xf32, #tpu.memory_space<vmem>>, vector<1x32x256xf32>
    %1 = vector.shape_cast %0 : vector<1x32x256xf32> to vector<32x256xf32>
    %c0_2 = arith.constant 0 : index
    %c0_3 = arith.constant 0 : index
    %2 = vector.load %arg3[%c0_2, %c0_3] : memref<32x32xf32, #tpu.memory_space<vmem>>, vector<32x32xf32>
    %c0_4 = arith.constant 0 : index
    %c0_5 = arith.constant 0 : index
    %3 = vector.load %arg4[%c0_4, %c0_5] : memref<32x1xf32, #tpu.memory_space<vmem>>, vector<32x1xf32>
    %4 = vector.shape_cast %3 : vector<32x1xf32> to vector<32x1xf32>
    %5 = vector.broadcast %4 : vector<32x1xf32> to vector<32x256xf32>
    %cst = arith.constant dense<0.000000e+00> : vector<32x256xf32>
    %6 = tpu.matmul %2, %1, %cst {dimension_numbers = #tpu.dot_dimension_numbers<[1], [0], [0], [1], [0, 0, 1, 1], [], []>, precision = #tpu.contract_precision<fp32>} : vector<32x32xf32>, vector<32x256xf32>, vector<32x256xf32> -> vector<32x256xf32>
    %7 = arith.addf %6, %5 : vector<32x256xf32>
    %cst_6 = arith.constant 0.000000e+00 : f32
    %8 = vector.broadcast %cst_6 : f32 to vector<32x256xf32>
    %9 = arith.maximumf %7, %8 : vector<32x256xf32>
    %10 = arith.addf %9, %1 : vector<32x256xf32>
    %cst_7 = arith.constant dense<0.000000e+00> : vector<32x256xf32>
    %11 = tpu.matmul %2, %10, %cst_7 {dimension_numbers = #tpu.dot_dimension_numbers<[1], [0], [0], [1], [0, 0, 1, 1], [], []>, precision = #tpu.contract_precision<fp32>} : vector<32x32xf32>, vector<32x256xf32>, vector<32x256xf32> -> vector<32x256xf32>
    %12 = arith.addf %11, %5 : vector<32x256xf32>
    %cst_8 = arith.constant 0.000000e+00 : f32
    %13 = vector.broadcast %cst_8 : f32 to vector<32x256xf32>
    %14 = arith.maximumf %12, %13 : vector<32x256xf32>
    %15 = arith.addf %14, %10 : vector<32x256xf32>
    %cst_9 = arith.constant dense<0.000000e+00> : vector<32x256xf32>
    %16 = tpu.matmul %2, %15, %cst_9 {dimension_numbers = #tpu.dot_dimension_numbers<[1], [0], [0], [1], [0, 0, 1, 1], [], []>, precision = #tpu.contract_precision<fp32>} : vector<32x32xf32>, vector<32x256xf32>, vector<32x256xf32> -> vector<32x256xf32>
    %17 = arith.addf %16, %5 : vector<32x256xf32>
    %cst_10 = arith.constant 0.000000e+00 : f32
    %18 = vector.broadcast %cst_10 : f32 to vector<32x256xf32>
    %19 = arith.maximumf %17, %18 : vector<32x256xf32>
    %20 = arith.addf %19, %15 : vector<32x256xf32>
    %c0_11 = arith.constant 0 : index
    %c0_12 = arith.constant 0 : index
    %c0_13 = arith.constant 0 : index
    %21 = vector.load %arg5[%c0_11, %c0_12, %c0_13] : memref<1x32x256xf32, #tpu.memory_space<vmem>>, vector<1x32x256xf32>
    %22 = vector.shape_cast %21 : vector<1x32x256xf32> to vector<32x256xf32>
    %23 = vector.shape_cast %20 : vector<32x256xf32> to vector<1x32x256xf32>
    tpu.vector_store %arg5[%c0_11, %c0_12, %c0_13], %23 {strides = array<i32>} : memref<1x32x256xf32, #tpu.memory_space<vmem>>, vector<1x32x256xf32>,
    return
  }
  func.func @transform_0(%arg0: i32, %arg1: i32) -> (i32, i32, i32) {
    %c0_i32 = arith.constant 0 : i32
    %c0_i32_0 = arith.constant 0 : i32
    return %arg0, %c0_i32, %arg1 : i32, i32, i32
  }
  func.func @transform_1(%arg0: i32, %arg1: i32) -> (i32, i32) {
    %c0_i32 = arith.constant 0 : i32
    %c0_i32_0 = arith.constant 0 : i32
    %c0_i32_1 = arith.constant 0 : i32
    return %c0_i32, %c0_i32_0 : i32, i32
  }
  func.func @transform_2(%arg0: i32, %arg1: i32) -> (i32, i32) {
    %c0_i32 = arith.constant 0 : i32
    %c0_i32_0 = arith.constant 0 : i32
    %c0_i32_1 = arith.constant 0 : i32
    return %c0_i32, %c0_i32_0 : i32, i32
  }
  func.func @transform_3(%arg0: i32, %arg1: i32) -> (i32, i32, i32) {
    %c0_i32 = arith.constant 0 : i32
    %c0_i32_0 = arith.constant 0 : i32
    return %arg0, %c0_i32, %arg1 : i32, i32, i32
  }
}

</mosaic_0001>

<llo_original>
// kernel: tpu_custom_call.1
$region0: #{tpu_custom_call.1}
  #allocation0 [shape = 'u32[]', space=smem, size = 0x4, offset = 0x4, fixed_abs, tag = 'smem constant byte address 0x4 - core index']
  #allocation1 [shape = 'u32[144,128]{1,0:T(1,128)}', space=vmem, size = 0x12000, scoped, tag = 'internal scratch']
  %s0 = inlined_call_operand.hbm [shape: f32[2,32,256], index: 0, kind: input, shape index: {}]
  %s1 = inlined_call_operand.vmem [shape: f32[32,32], index: 1, kind: input, shape index: {}]
  %s2 = inlined_call_operand.vmem [shape: f32[32,1], index: 2, kind: input, shape index: {}]
  %s3 = inlined_call_operand.hbm [shape: f32[2,32,256], index: 3, kind: output, shape index: {}]
  %s4 = sld [smem:[#allocation0]]
  $region49: #{tpu_custom_call.1} parent=0
    _
  %s6 = ssub.s32 1, %s4
  %s7 = scalar_select 0, %s6, %s4
  $region1: #{tpu_custom_call.1} parent=0
    #allocation2 [shape = 'u8[65536]{0}', space=vmem, size = 0x10000, scoped, tag = 'input window, operand 0']
    #allocation3 [shape = 's32[2]{0}', space=sflag, size = 0x8, scoped, tag = 'scoped memory for tpu_custom_call.1']
    #allocation4 [shape = 's32[2]{0}', space=sflag, size = 0x8, scoped, tag = 'scoped memory for tpu_custom_call.1']
    #allocation5 [shape = 'u8[65536]{0}', space=vmem, size = 0x10000, scoped, tag = 'output window, operand 0']
    %8 = vsyncpa [#allocation3], 0
    %s9 = scalar_lea.sflag [#allocation3], 1
    %10 = vsyncpa %s9, 0
    %11 = vsyncpa [#allocation4], 0
    %s12 = scalar_lea.sflag [#allocation4], 1
    %13 = vsyncpa %s12, 0
    loop: start=0, step=1, limit=4
    $region2: #{tpu_custom_call.1} parent=1 // loop_pre_header
      _
    $region3: #{tpu_custom_call.1} parent=1 // loop_header
      %s15 = sphi 0, %s19
      %p16 = scmp.ge.s32.totalorder %s15, 4
      %s22 = sphi 0, %s34
      %s23 = sphi 0, %s30
      %s24 = sphi 0, %s22
      %s25 = sphi 0, %s23
      %s26 = sphi 0, %s24
      %s27 = sphi 0, %s25
      %s39 = sphi 0, %s41
      %s42 = sphi 0, %s39
      %s43 = sphi 0, %s42
      %s59 = sphi 0, %s43
      %s63 = sphi 0, %s63
      %s65 = sphi 0, %s63
      %s66 = sphi 0, %s65
      %s80 = sphi 0, %s66
      %s84 = sphi 0, %s84
      %s86 = sphi 0, %s84
      %s87 = sphi 0, %s86
      %s101 = sphi 0, %s87
      %s109 = sphi 0, %s111
      %s112 = sphi 0, %s109
      %s113 = sphi 0, %s112
      %s129 = sphi 0, %s113
    $region4: #{tpu_custom_call.1} parent=1 // loop_header_branch
      %18 = sbr.rel (%p16) target = $region8
    $region5: #{tpu_custom_call.1} parent=1 // loop_body
      %s20 = ssub.s32 %s15, 1
      %s21 = ssub.s32 %s15, 2
      %s28 = sadd.s32 1, %s23
      %p29 = scmp.ge.s32.totalorder %s28, 1
      %s30 = scalar_select %p29, 0, %s28
      %s31 = sadd.s32 1, %s22
      %s32 = scalar_select %p29, %s31, %s22
      %p33 = scmp.ge.s32.totalorder %s32, 2
      %s34 = scalar_select %p33, 0, %s32
      %s35 = ssub.s32 %s22, %s34
      %s36 = ssub.s32 %s23, %s30
      %s37 = sor.u32 %s35, %s36
      %p38 = scmp.eq.s32.totalorder %s37, 0
      %s40 = sadd.s32 %s39, 1
      %s41 = scalar_select %p38, %s39, %s40
      %p44 = pneg %p38
      %p45 = scmp.eq.s32.totalorder %s15, 1
      %p46 = por %p44, %p45
      %p47 = scmp.ne.s32.totalorder %s39, %s42
      %p48 = scmp.eq.s32.totalorder %s15, 0
      %p49 = por %p47, %p48
      %p50 = scmp.ne.s32.totalorder %s39, %s42
      %p51 = scmp.eq.s32.totalorder %s20, 1
      %p52 = por %p50, %p51
      %p53 = scmp.ne.s32.totalorder %s42, %s43
      %p54 = scmp.eq.s32.totalorder %s20, 0
      %p55 = por %p53, %p54
      %p56 = scmp.ne.s32.totalorder %s42, %s43
      %p57 = scmp.eq.s32.totalorder %s21, 1
      %p58 = por %p56, %p57
      %p60 = scmp.ne.s32.totalorder %s43, %s59
      %p61 = scmp.eq.s32.totalorder %s21, 0
      %p62 = por %p60, %p61
      %s64 = sadd.s32 %s63, 1
      %p67 = scmp.eq.s32.totalorder %s15, 1
      %p68 = scmp.ne.s32.totalorder %s63, %s65
      %p69 = scmp.eq.s32.totalorder %s15, 0
      %p70 = por %p68, %p69
      %p71 = scmp.ne.s32.totalorder %s63, %s65
      %p72 = scmp.eq.s32.totalorder %s20, 1
      %p73 = por %p71, %p72
      %p74 = scmp.ne.s32.totalorder %s65, %s66
      %p75 = scmp.eq.s32.totalorder %s20, 0
      %p76 = por %p74, %p75
      %p77 = scmp.ne.s32.totalorder %s65, %s66
      %p78 = scmp.eq.s32.totalorder %s21, 1
      %p79 = por %p77, %p78
      %p81 = scmp.ne.s32.totalorder %s66, %s80
      %p82 = scmp.eq.s32.totalorder %s21, 0
      %p83 = por %p81, %p82
      %s85 = sadd.s32 %s84, 1
      %p88 = scmp.eq.s32.totalorder %s15, 1
      %p89 = scmp.ne.s32.totalorder %s84, %s86
      %p90 = scmp.eq.s32.totalorder %s15, 0
      %p91 = por %p89, %p90
      %p92 = scmp.ne.s32.totalorder %s84, %s86
      %p93 = scmp.eq.s32.totalorder %s20, 1
      %p94 = por %p92, %p93
      %p95 = scmp.ne.s32.totalorder %s86, %s87
      %p96 = scmp.eq.s32.totalorder %s20, 0
      %p97 = por %p95, %p96
      %p98 = scmp.ne.s32.totalorder %s86, %s87
      %p99 = scmp.eq.s32.totalorder %s21, 1
      %p100 = por %p98, %p99
      %p102 = scmp.ne.s32.totalorder %s87, %s101
      %p103 = scmp.eq.s32.totalorder %s21, 0
      %p104 = por %p102, %p103
      %s105 = ssub.s32 %s22, %s34
      %s106 = ssub.s32 %s23, %s30
      %s107 = sor.u32 %s105, %s106
      %p108 = scmp.eq.s32.totalorder %s107, 0
      %s110 = sadd.s32 %s109, 1
      %s111 = scalar_select %p108, %s109, %s110
      %p114 = pneg %p108
      %p115 = scmp.eq.s32.totalorder %s15, 1
      %p116 = por %p114, %p115
      %p117 = scmp.ne.s32.totalorder %s109, %s112
      %p118 = scmp.eq.s32.totalorder %s15, 0
      %p119 = por %p117, %p118
      %p120 = scmp.ne.s32.totalorder %s109, %s112
      %p121 = scmp.eq.s32.totalorder %s20, 1
      %p122 = por %p120, %p121
      %p123 = scmp.ne.s32.totalorder %s112, %s113
      %p124 = scmp.eq.s32.totalorder %s20, 0
      %p125 = por %p123, %p124
      %p126 = scmp.ne.s32.totalorder %s112, %s113
      %p127 = scmp.eq.s32.totalorder %s21, 1
      %p128 = por %p126, %p127
      %p130 = scmp.ne.s32.totalorder %s113, %s129
      %p131 = scmp.eq.s32.totalorder %s21, 0
      %p132 = por %p130, %p131
      %p133 = scmp.le.s32.totalorder 1, %s15
      %p134 = scmp.lt.s32.totalorder %s15, 3
      %p135 = pnand %p133, %p134
      %p136 = pneg %p135
      // Predicated region
      $region9: #{tpu_custom_call.1} parent=5 // pred_check
        _
      $region10: #{tpu_custom_call.1} parent=5 // pred_check_branch
        %138 = sbr.rel (%p135) target = $region12
      $region11: #{tpu_custom_call.1} parent=5 // pred_region
        %s139 = ssub.s32 %s15, 1
        // Predicated region
        $region13: #{tpu_custom_call.1} parent=11 // pred_check
          %p140 = pneg %p76
        $region14: #{tpu_custom_call.1} parent=11 // pred_check_branch
          %142 = sbr.rel (%p140) target = $region16
        $region15: #{tpu_custom_call.1} parent=11 // pred_region
          _
        $region16: #{tpu_custom_call.1} parent=11 // pred_fallthru
          _
        // Predicated region
        $region17: #{tpu_custom_call.1} parent=11 // pred_check
          %p143 = pneg %p97
        $region18: #{tpu_custom_call.1} parent=11 // pred_check_branch
          %145 = sbr.rel (%p143) target = $region20
        $region19: #{tpu_custom_call.1} parent=11 // pred_region
          _
        $region20: #{tpu_custom_call.1} parent=11 // pred_fallthru
          _
      $region12: #{tpu_custom_call.1} parent=5 // pred_fallthru
        _
      %p146 = scmp.lt.s32.totalorder %s15, 2
      // Predicated region
      $region21: #{tpu_custom_call.1} parent=5 // pred_check
        %p147 = pneg %p146
      $region22: #{tpu_custom_call.1} parent=5 // pred_check_branch
        %149 = sbr.rel (%p147) target = $region24
      $region23: #{tpu_custom_call.1} parent=5 // pred_region
        // Predicated region
        $region25: #{tpu_custom_call.1} parent=23 // pred_check
          %p150 = pneg %p49
        $region26: #{tpu_custom_call.1} parent=23 // pred_check_branch
          %152 = sbr.rel (%p150) target = $region28
        $region27: #{tpu_custom_call.1} parent=23 // pred_region
          %s153 = sand.u32 %s39, 1
          %s154 = scalar_lea.sflag [#allocation3], %s153
          %s155 = sand.u32 %s39, 1
          %s156 = smul.addr %s155, 64
          %s157 = scalar_lea.vmem [#allocation2], %s156
          %s158 = smul.u32 2, %s23
          %s160 = ssub.s32 1024, 1024
          %161 = vsyncadd %s154, %s160
          %s162 = smul.addr %s22, 8
          %s163 = sadd.s32 %s158, %s162
          %s164 = smul.addr %s163, 128
          %s165 = scalar_lea.hbm %s0, %s164
          %s166 = sshll.u32 %s157, 4
          %s167 = int_to_ptr.vmem [resolvable:$true] %s166
          %172 = dma.hbm_to_vmem [thread:$0]  %s165, 1024, %s167, %s154, 256, 256, 16
        $region28: #{tpu_custom_call.1} parent=23 // pred_fallthru
          _
      $region24: #{tpu_custom_call.1} parent=5 // pred_fallthru
        _
      %p173 = scmp.le.s32.totalorder 1, %s15
      %p174 = scmp.lt.s32.totalorder %s15, 3
      %p175 = pnand %p173, %p174
      %p176 = pneg %p175
      // Predicated region
      $region29: #{tpu_custom_call.1} parent=5 // pred_check
        _
      $region30: #{tpu_custom_call.1} parent=5 // pred_check_branch
        %178 = sbr.rel (%p175) target = $region32
      $region31: #{tpu_custom_call.1} parent=5 // pred_region
        %s179 = ssub.s32 %s15, 1
        %s180 = sand.u32 %s42, 1
        %s181 = scalar_lea.sflag [#allocation3], %s180
        %s182 = sand.u32 %s42, 1
        %s183 = smul.addr %s182, 64
        %s184 = scalar_lea.vmem [#allocation2], %s183
        // Predicated region
        $region33: #{tpu_custom_call.1} parent=31 // pred_check
          %p185 = pneg %p55
        $region34: #{tpu_custom_call.1} parent=31 // pred_check_branch
          %187 = sbr.rel (%p185) target = $region36
        $region35: #{tpu_custom_call.1} parent=31 // pred_region
          %188 = dma.done %s181, 1024
        $region36: #{tpu_custom_call.1} parent=31 // pred_fallthru
          _
        %s189 = sand.u32 %s42, 1
        %s190 = scalar_lea.sflag [#allocation3], %s189
        %s191 = sand.u32 %s42, 1
        %s192 = smul.addr %s191, 64
        %s193 = scalar_lea.vmem [#allocation2], %s192
        %p194 = pneg %p55
        %p195 = pneg %p52
        %p196 = pneg %p76
        %p197 = pneg %p73
        %p198 = pneg %p97
        %p199 = pneg %p94
        %p200 = pneg %p125
        %p201 = pneg %p122
        %s202 = sand.u32 %s112, 1
        %s203 = scalar_lea.sflag [#allocation4], %s202
        %s204 = sand.u32 %s112, 1
        %s205 = smul.addr %s204, 64
        %s206 = scalar_lea.vmem [#allocation5], %s205
        %s207 = smul.u32 2, %s25
        %s208 = smul.u32 2, %s25
        %v209 = vld [vmem:[%s184] sm:$0xff]
        %v210 = vld [vmem:[%s184 + $0x8] sm:$0xff]
        %v211 = vld [vmem:[%s184 + $0x10] sm:$0xff]
        %v212 = vld [vmem:[%s184 + $0x18] sm:$0xff]
        %v213 = vld [vmem:[%s184 + $0x20] sm:$0xff]
        %v214 = vld [vmem:[%s184 + $0x28] sm:$0xff]
        %v215 = vld [vmem:[%s184 + $0x30] sm:$0xff]
        %v216 = vld [vmem:[%s184 + $0x38] sm:$0xff]
        %v217 = vld [vmem:[%s1] sm:$0xff]
        %v218 = vld [vmem:[%s1 + $0x8] sm:$0xff]
        %v219 = vld [vmem:[%s1 + $0x10] sm:$0xff]
        %v220 = vld [vmem:[%s1 + $0x18] sm:$0xff]
        %v221 = vld [vmem:[%s2] sm:$0xff]
        %v222 = vld [vmem:[%s2 + $0x8] sm:$0xff]
        %v223 = vld [vmem:[%s2 + $0x10] sm:$0xff]
        %v224 = vld [vmem:[%s2 + $0x18] sm:$0xff]
        %226 = vset.pattern.permute.xlu0 0
        %227 = vperm.xlu0 %226, %v221
        %v228 = vpop.permute.xlu0 %227
        %231 = vset.pattern.permute.xlu0 0
        %232 = vperm.xlu0 %231, %v222
        %v233 = vpop.permute.xlu0 %232
        %236 = vset.pattern.permute.xlu0 0
        %237 = vperm.xlu0 %236, %v223
        %v238 = vpop.permute.xlu0 %237
        %241 = vset.pattern.permute.xlu0 0
        %242 = vperm.xlu0 %241, %v224
        %v243 = vpop.permute.xlu0 %242
        %vm245 = vcmask 261120
        %v247 = vsel %vm245, %v217, 0
        %v250 = vsel %vm245, %v218, 0
        %v253 = vsel %vm245, %v219, 0
        %v256 = vsel %vm245, %v220, 0
        %v258 = vand.u32 %v210, 4294901760
        %259 = vmatprep.subr.mxu0 %v258
        %v260 = vand.u32 %v209, 4294901760
        %261 = vmatpush1.msra.mxu0 %v260
        %v262 = vand.u32 %v212, 4294901760
        %263 = vmatprep.subr.mxu0 %v262
        %v264 = vand.u32 %v211, 4294901760
        %265 = vmatpush1.msra.mxu0 %v264
        %v266 = vand.u32 %v214, 4294901760
        %267 = vmatprep.subr.mxu0 %v266
        %v268 = vand.u32 %v213, 4294901760
        %269 = vmatpush1.msra.mxu0 %v268
        %v270 = vand.u32 %v216, 4294901760
        %271 = vmatprep.subr.mxu0 %v270
        %v272 = vand.u32 %v215, 4294901760
        %273 = vmatpush1.msra.mxu0 %v272
        %274 = vmatprep.subr.mxu0 0.0
        %275 = vmatpush1.msra.mxu0 0.0
        %276 = vmatprep.subr.mxu0 0.0
        %277 = vmatpush1.msra.mxu0 0.0
        %278 = vmatprep.subr.mxu0 0.0
        %279 = vmatpush1.msra.mxu0 0.0
        %280 = vmatprep.subr.mxu0 0.0
        %281 = vmatpush1.msra.mxu0 0.0
        %282 = vmatprep.subr.mxu0 0.0
        %283 = vmatpush1.msra.mxu0 0.0
        %284 = vmatprep.subr.mxu0 0.0
        %285 = vmatpush1.msra.mxu0 0.0
        %286 = vmatprep.subr.mxu0 0.0
        %287 = vmatpush1.msra.mxu0 0.0
        %288 = vmatprep.subr.mxu0 0.0
        %289 = vmatpush1.msra.mxu0 0.0
        %290 = vmatprep.subr.mxu0 0.0
        %291 = vmatpush1.msra.mxu0 0.0
        %292 = vmatprep.subr.mxu0 0.0
        %293 = vmatpush1.msra.mxu0 0.0
        %294 = vmatprep.subr.mxu0 0.0
        %295 = vmatpush1.msra.mxu0 0.0
        %296 = vmatprep.subr.mxu0 0.0
        %297 = vmatpush1.msra.mxu0 0.0
        %298 = vmatprep.subr.mxu0 0.0
        %299 = vmatpush1.msra.mxu0 0.0
        %300 = vmatprep.subr.mxu0 0.0
        %301 = vmatpush1.msra.mxu0 0.0
        %302 = vmatprep.subr.mxu0 0.0
        %303 = vmatpush1.msra.mxu0 0.0
        %304 = vmatprep.subr.mxu0 0.0
        %305 = vmatpush1.msra.mxu0 0.0
        %306 = vmatprep.subr.mxu0 0.0
        %307 = vmatpush1.msra.mxu0 0.0
        %308 = vmatprep.subr.mxu0 0.0
        %309 = vmatpush1.msra.mxu0 0.0
        %310 = vmatprep.subr.mxu0 0.0
        %311 = vmatpush1.msra.mxu0 0.0
        %312 = vmatprep.subr.mxu0 0.0
        %313 = vmatpush1.msra.mxu0 0.0
        %314 = vmatprep.subr.mxu0 0.0
        %315 = vmatpush1.msra.mxu0 0.0
        %316 = vmatprep.subr.mxu0 0.0
        %317 = vmatpush1.msra.mxu0 0.0
        %318 = vmatprep.subr.mxu0 0.0
        %319 = vmatpush1.msra.mxu0 0.0
        %320 = vmatprep.subr.mxu0 0.0
        %321 = vmatpush1.msra.mxu0 0.0
        %322 = vmatprep.subr.mxu0 0.0
        %323 = vmatpush1.msra.mxu0 0.0
        %324 = vmatprep.subr.mxu0 0.0
        %325 = vmatpush1.msra.mxu0 0.0
        %326 = vmatprep.subr.mxu0 0.0
        %327 = vmatpush1.msra.mxu0 0.0
        %328 = vmatprep.subr.mxu0 0.0
        %329 = vmatpush1.msra.mxu0 0.0
        %330 = vmatprep.mubr.f32.mxu0 0.0
        %v331 = vand.u32 %v247, 4294901760
        %v332 = vsub.f32 %v247, %v331
        %v333 = vand.u32 %v332, 4294901760
        %v334 = vsub.f32 %v332, %v333
        %v335 = vand.u32 %v334, 4294901760
        %336 = vmatmul.mubr.f32.gmra.mrb[0].mxu0 %v335
        %v337 = vpop.f32.mrb[0].mxu0
        %v338 = vadd.f32 %v228, %v337
        %v339 = vpop.f32.mrb[0].mxu0
        %v340 = vadd.f32 %v228, %v339
        %341 = vmatprep.mubr.f32.mxu0 0.0
        %v342 = vand.u32 %v250, 4294901760
        %v343 = vsub.f32 %v250, %v342
        %v344 = vand.u32 %v343, 4294901760
        %v345 = vsub.f32 %v343, %v344
        %v346 = vand.u32 %v345, 4294901760
        %347 = vmatmul.mubr.f32.gmra.mrb[0].mxu0 %v346
        %v348 = vpop.f32.mrb[0].mxu0
        %v349 = vadd.f32 %v233, %v348
        %v350 = vpop.f32.mrb[0].mxu0
        %v351 = vadd.f32 %v233, %v350
        %352 = vmatprep.mubr.f32.mxu0 0.0
        %v353 = vand.u32 %v253, 4294901760
        %v354 = vsub.f32 %v253, %v353
        %v355 = vand.u32 %v354, 4294901760
        %v356 = vsub.f32 %v354, %v355
        %v357 = vand.u32 %v356, 4294901760
        %358 = vmatmul.mubr.f32.gmra.mrb[0].mxu0 %v357
        %v359 = vpop.f32.mrb[0].mxu0
        %v360 = vadd.f32 %v238, %v359
        %v361 = vpop.f32.mrb[0].mxu0
        %v362 = vadd.f32 %v238, %v361
        %363 = vmatprep.mubr.f32.mxu0 0.0
        %v364 = vand.u32 %v256, 4294901760
        %v365 = vsub.f32 %v256, %v364
        %v366 = vand.u32 %v365, 4294901760
        %v367 = vsub.f32 %v365, %v366
        %v368 = vand.u32 %v367, 4294901760
        %369 = vmatmul.mubr.f32.gmra.mrb[0].mxu0 %v368
        %v370 = vpop.f32.mrb[0].mxu0
        %v371 = vadd.f32 %v243, %v370
        %v372 = vpop.f32.mrb[0].mxu0
        %v373 = vadd.f32 %v243, %v372
        %374 = vdwg.mxu0
        %v375 = vand.u32 %v210, 4294901760
        %v376 = vsub.f32 %v210, %v375
        %v377 = vand.u32 %v376, 4294901760
        %v378 = vsub.f32 %v376, %v377
        %v379 = vand.u32 %v378, 4294901760
        %380 = vmatprep.subr.mxu0 %v379
        %v381 = vand.u32 %v209, 4294901760
        %v382 = vsub.f32 %v209, %v381
        %v383 = vand.u32 %v382, 4294901760
        %v384 = vsub.f32 %v382, %v383
        %v385 = vand.u32 %v384, 4294901760
        %386 = vmatpush1.msra.mxu0 %v385
        %v387 = vand.u32 %v212, 4294901760
        %v388 = vsub.f32 %v212, %v387
        %v389 = vand.u32 %v388, 4294901760
        %v390 = vsub.f32 %v388, %v389
        %v391 = vand.u32 %v390, 4294901760
        %392 = vmatprep.subr.mxu0 %v391
        %v393 = vand.u32 %v211, 4294901760
        %v394 = vsub.f32 %v211, %v393
        %v395 = vand.u32 %v394, 4294901760
        %v396 = vsub.f32 %v394, %v395
        %v397 = vand.u32 %v396, 4294901760
        %398 = vmatpush1.msra.mxu0 %v397
        %v399 = vand.u32 %v214, 4294901760
        %v400 = vsub.f32 %v214, %v399
        %v401 = vand.u32 %v400, 4294901760
        %v402 = vsub.f32 %v400, %v401
        %v403 = vand.u32 %v402, 4294901760
        %404 = vmatprep.subr.mxu0 %v403
        %v405 = vand.u32 %v213, 4294901760
        %v406 = vsub.f32 %v213, %v405
        %v407 = vand.u32 %v406, 4294901760
        %v408 = vsub.f32 %v406, %v407
        %v409 = vand.u32 %v408, 4294901760
        %410 = vmatpush1.msra.mxu0 %v409
        %v411 = vand.u32 %v216, 4294901760
        %v412 = vsub.f32 %v216, %v411
        %v413 = vand.u32 %v412, 4294901760
        %v414 = vsub.f32 %v412, %v413
        %v415 = vand.u32 %v414, 4294901760
        %416 = vmatprep.subr.mxu0 %v415
        %v417 = vand.u32 %v215, 4294901760
        %v418 = vsub.f32 %v215, %v417
        %v419 = vand.u32 %v418, 4294901760
        %v420 = vsub.f32 %v418, %v419
        %v421 = vand.u32 %v420, 4294901760
        %422 = vmatpush1.msra.mxu0 %v421
        %423 = vmatprep.subr.mxu0 0.0
        %424 = vmatpush1.msra.mxu0 0.0
        %425 = vmatprep.subr.mxu0 0.0
        %426 = vmatpush1.msra.mxu0 0.0
        %427 = vmatprep.subr.mxu0 0.0
        %428 = vmatpush1.msra.mxu0 0.0
        %429 = vmatprep.subr.mxu0 0.0
        %430 = vmatpush1.msra.mxu0 0.0
        %431 = vmatprep.subr.mxu0 0.0
        %432 = vmatpush1.msra.mxu0 0.0
        %433 = vmatprep.subr.mxu0 0.0
        %434 = vmatpush1.msra.mxu0 0.0
        %435 = vmatprep.subr.mxu0 0.0
        %436 = vmatpush1.msra.mxu0 0.0
        %437 = vmatprep.subr.mxu0 0.0
        %438 = vmatpush1.msra.mxu0 0.0
        %439 = vmatprep.subr.mxu0 0.0
        %440 = vmatpush1.msra.mxu0 0.0
        %441 = vmatprep.subr.mxu0 0.0
        %442 = vmatpush1.msra.mxu0 0.0
        %443 = vmatprep.subr.mxu0 0.0
        %444 = vmatpush1.msra.mxu0 0.0
        %445 = vmatprep.subr.mxu0 0.0
        %446 = vmatpush1.msra.mxu0 0.0
        %447 = vmatprep.subr.mxu0 0.0
        %448 = vmatpush1.msra.mxu0 0.0
        %449 = vmatprep.subr.mxu0 0.0
        %450 = vmatpush1.msra.mxu0 0.0
        %451 = vmatprep.subr.mxu0 0.0
        %452 = vmatpush1.msra.mxu0 0.0
        %453 = vmatprep.subr.mxu0 0.0
        %454 = vmatpush1.msra.mxu0 0.0
        %455 = vmatprep.subr.mxu0 0.0
        %456 = vmatpush1.msra.mxu0 0.0
        %457 = vmatprep.subr.mxu0 0.0
        %458 = vmatpush1.msra.mxu0 0.0
        %459 = vmatprep.subr.mxu0 0.0
        %460 = vmatpush1.msra.mxu0 0.0
        %461 = vmatprep.subr.mxu0 0.0
        %462 = vmatpush1.msra.mxu0 0.0
        %463 = vmatprep.subr.mxu0 0.0
        %464 = vmatpush1.msra.mxu0 0.0
        %465 = vmatprep.subr.mxu0 0.0
        %466 = vmatpush1.msra.mxu0 0.0
        %467 = vmatprep.subr.mxu0 0.0
        %468 = vmatpush1.msra.mxu0 0.0
        %469 = vmatprep.subr.mxu0 0.0
        %470 = vmatpush1.msra.mxu0 0.0
        %471 = vmatprep.subr.mxu0 0.0
        %472 = vmatpush1.msra.mxu0 0.0
        %473 = vmatprep.subr.mxu0 0.0
        %474 = vmatpush1.msra.mxu0 0.0
        %475 = vmatprep.subr.mxu0 0.0
        %476 = vmatpush1.msra.mxu0 0.0
        %477 = vmatprep.subr.mxu0 0.0
        %478 = vmatpush1.msra.mxu0 0.0
        %479 = vmatprep.mubr.f32.mxu0 0.0
        %v480 = vand.u32 %v247, 4294901760
        %481 = vmatmul.mubr.f32.gmra.mrb[0].mxu0 %v480
        %v482 = vpop.f32.mrb[0].mxu0
        %v483 = vadd.f32 %v338, %v482
        %v484 = vpop.f32.mrb[0].mxu0
        %v485 = vadd.f32 %v340, %v484
        %486 = vmatprep.mubr.f32.mxu0 0.0
        %v487 = vand.u32 %v250, 4294901760
        %488 = vmatmul.mubr.f32.gmra.mrb[0].mxu0 %v487
        %v489 = vpop.f32.mrb[0].mxu0
        %v490 = vadd.f32 %v349, %v489
        %v491 = vpop.f32.mrb[0].mxu0
        %v492 = vadd.f32 %v351, %v491
        %493 = vmatprep.mubr.f32.mxu0 0.0
        %v494 = vand.u32 %v253, 4294901760
        %495 = vmatmul.mubr.f32.gmra.mrb[0].mxu0 %v494
        %v496 = vpop.f32.mrb[0].mxu0
        %v497 = vadd.f32 %v360, %v496
        %v498 = vpop.f32.mrb[0].mxu0
        %v499 = vadd.f32 %v362, %v498
        %500 = vmatprep.mubr.f32.mxu0 0.0
        %v501 = vand.u32 %v256, 4294901760
        %502 = vmatmul.mubr.f32.gmra.mrb[0].mxu0 %v501
        %v503 = vpop.f32.mrb[0].mxu0
        %v504 = vadd.f32 %v371, %v503
        %v505 = vpop.f32.mrb[0].mxu0
        %v506 = vadd.f32 %v373, %v505
        %507 = vdwg.mxu0
        %v508 = vand.u32 %v210, 4294901760
        %v509 = vsub.f32 %v210, %v508
        %510 = vmatprep.subr.mxu0 %v509
        %v511 = vand.u32 %v209, 4294901760
        %v512 = vsub.f32 %v209, %v511
        %513 = vmatpush1.msra.mxu0 %v512
        %v514 = vand.u32 %v212, 4294901760
        %v515 = vsub.f32 %v212, %v514
        %516 = vmatprep.subr.mxu0 %v515
        %v517 = vand.u32 %v211, 4294901760
        %v518 = vsub.f32 %v211, %v517
        %519 = vmatpush1.msra.mxu0 %v518
        %v520 = vand.u32 %v214, 4294901760
        %v521 = vsub.f32 %v214, %v520
        %522 = vmatprep.subr.mxu0 %v521
        %v523 = vand.u32 %v213, 4294901760
        %v524 = vsub.f32 %v213, %v523
        %525 = vmatpush1.msra.mxu0 %v524
        %v526 = vand.u32 %v216, 4294901760
        %v527 = vsub.f32 %v216, %v526
        %528 = vmatprep.subr.mxu0 %v527
        %v529 = vand.u32 %v215, 4294901760
        %v530 = vsub.f32 %v215, %v529
        %531 = vmatpush1.msra.mxu0 %v530
        %532 = vmatprep.subr.mxu0 0.0
        %533 = vmatpush1.msra.mxu0 0.0
        %534 = vmatprep.subr.mxu0 0.0
        %535 = vmatpush1.msra.mxu0 0.0
        %536 = vmatprep.subr.mxu0 0.0
        %537 = vmatpush1.msra.mxu0 0.0
        %538 = vmatprep.subr.mxu0 0.0
        %539 = vmatpush1.msra.mxu0 0.0
        %540 = vmatprep.subr.mxu0 0.0
        %541 = vmatpush1.msra.mxu0 0.0
        %542 = vmatprep.subr.mxu0 0.0
        %543 = vmatpush1.msra.mxu0 0.0
        %544 = vmatprep.subr.mxu0 0.0
        %545 = vmatpush1.msra.mxu0 0.0
        %546 = vmatprep.subr.mxu0 0.0
        %547 = vmatpush1.msra.mxu0 0.0
        %548 = vmatprep.subr.mxu0 0.0
        %549 = vmatpush1.msra.mxu0 0.0
        %550 = vmatprep.subr.mxu0 0.0
        %551 = vmatpush1.msra.mxu0 0.0
        %552 = vmatprep.subr.mxu0 0.0
        %553 = vmatpush1.msra.mxu0 0.0
        %554 = vmatprep.subr.mxu0 0.0
        %555 = vmatpush1.msra.mxu0 0.0
        %556 = vmatprep.subr.mxu0 0.0
        %557 = vmatpush1.msra.mxu0 0.0
        %558 = vmatprep.subr.mxu0 0.0
        %559 = vmatpush1.msra.mxu0 0.0
        %560 = vmatprep.subr.mxu0 0.0
        %561 = vmatpush1.msra.mxu0 0.0
        %562 = vmatprep.subr.mxu0 0.0
        %563 = vmatpush1.msra.mxu0 0.0
        %564 = vmatprep.subr.mxu0 0.0
        %565 = vmatpush1.msra.mxu0 0.0
        %566 = vmatprep.subr.mxu0 0.0
        %567 = vmatpush1.msra.mxu0 0.0
        %568 = vmatprep.subr.mxu0 0.0
        %569 = vmatpush1.msra.mxu0 0.0
        %570 = vmatprep.subr.mxu0 0.0
        %571 = vmatpush1.msra.mxu0 0.0
        %572 = vmatprep.subr.mxu0 0.0
        %573 = vmatpush1.msra.mxu0 0.0
        %574 = vmatprep.subr.mxu0 0.0
        %575 = vmatpush1.msra.mxu0 0.0
        %576 = vmatprep.subr.mxu0 0.0
        %577 = vmatpush1.msra.mxu0 0.0
        %578 = vmatprep.subr.mxu0 0.0
        %579 = vmatpush1.msra.mxu0 0.0
        %580 = vmatprep.subr.mxu0 0.0
        %581 = vmatpush1.msra.mxu0 0.0
        %582 = vmatprep.subr.mxu0 0.0
        %583 = vmatpush1.msra.mxu0 0.0
        %584 = vmatprep.subr.mxu0 0.0
        %585 = vmatpush1.msra.mxu0 0.0
        %586 = vmatprep.subr.mxu0 0.0
        %587 = vmatpush1.msra.mxu0 0.0
        %588 = vmatprep.mubr.f32.mxu0 0.0
        %v589 = vand.u32 %v247, 4294901760
        %v590 = vsub.f32 %v247, %v589
        %591 = vmatmul.mubr.f32.gmra.mrb[0].mxu0 %v590
        %v592 = vpop.f32.mrb[0].mxu0
        %v593 = vadd.f32 %v483, %v592
        %v594 = vpop.f32.mrb[0].mxu0
        %v595 = vadd.f32 %v485, %v594
        %596 = vmatprep.mubr.f32.mxu0 0.0
        %v597 = vand.u32 %v250, 4294901760
        %v598 = vsub.f32 %v250, %v597
        %599 = vmatmul.mubr.f32.gmra.mrb[0].mxu0 %v598
        %v600 = vpop.f32.mrb[0].mxu0
        %v601 = vadd.f32 %v490, %v600
        %v602 = vpop.f32.mrb[0].mxu0
        %v603 = vadd.f32 %v492, %v602
        %604 = vmatprep.mubr.f32.mxu0 0.0
        %v605 = vand.u32 %v253, 4294901760
        %v606 = vsub.f32 %v253, %v605
        %607 = vmatmul.mubr.f32.gmra.mrb[0].mxu0 %v606
        %v608 = vpop.f32.mrb[0].mxu0
        %v609 = vadd.f32 %v497, %v608
        %v610 = vpop.f32.mrb[0].mxu0
        %v611 = vadd.f32 %v499, %v610
        %612 = vmatprep.mubr.f32.mxu0 0.0
        %v613 = vand.u32 %v256, 4294901760
        %v614 = vsub.f32 %v256, %v613
        %615 = vmatmul.mubr.f32.gmra.mrb[0].mxu0 %v614
        %v616 = vpop.f32.mrb[0].mxu0
        %v617 = vadd.f32 %v504, %v616
        %v618 = vpop.f32.mrb[0].mxu0
        %v619 = vadd.f32 %v506, %v618
        %620 = vdwg.mxu0
        %v621 = vand.u32 %v210, 4294901760
        %622 = vmatprep.subr.mxu0 %v621
        %v623 = vand.u32 %v209, 4294901760
        %624 = vmatpush1.msra.mxu0 %v623
        %v625 = vand.u32 %v212, 4294901760
        %626 = vmatprep.subr.mxu0 %v625
        %v627 = vand.u32 %v211, 4294901760
        %628 = vmatpush1.msra.mxu0 %v627
        %v629 = vand.u32 %v214, 4294901760
        %630 = vmatprep.subr.mxu0 %v629
        %v631 = vand.u32 %v213, 4294901760
        %632 = vmatpush1.msra.mxu0 %v631
        %v633 = vand.u32 %v216, 4294901760
        %634 = vmatprep.subr.mxu0 %v633
        %v635 = vand.u32 %v215, 4294901760
        %636 = vmatpush1.msra.mxu0 %v635
        %637 = vmatprep.subr.mxu0 0.0
        %638 = vmatpush1.msra.mxu0 0.0
        %639 = vmatprep.subr.mxu0 0.0
        %640 = vmatpush1.msra.mxu0 0.0
        %641 = vmatprep.subr.mxu0 0.0
        %642 = vmatpush1.msra.mxu0 0.0
        %643 = vmatprep.subr.mxu0 0.0
        %644 = vmatpush1.msra.mxu0 0.0
        %645 = vmatprep.subr.mxu0 0.0
        %646 = vmatpush1.msra.mxu0 0.0
        %647 = vmatprep.subr.mxu0 0.0
        %648 = vmatpush1.msra.mxu0 0.0
        %649 = vmatprep.subr.mxu0 0.0
        %650 = vmatpush1.msra.mxu0 0.0
        %651 = vmatprep.subr.mxu0 0.0
        %652 = vmatpush1.msra.mxu0 0.0
        %653 = vmatprep.subr.mxu0 0.0
        %654 = vmatpush1.msra.mxu0 0.0
        %655 = vmatprep.subr.mxu0 0.0
        %656 = vmatpush1.msra.mxu0 0.0
        %657 = vmatprep.subr.mxu0 0.0
        %658 = vmatpush1.msra.mxu0 0.0
        %659 = vmatprep.subr.mxu0 0.0
        %660 = vmatpush1.msra.mxu0 0.0
        %661 = vmatprep.subr.mxu0 0.0
        %662 = vmatpush1.msra.mxu0 0.0
        %663 = vmatprep.subr.mxu0 0.0
        %664 = vmatpush1.msra.mxu0 0.0
        %665 = vmatprep.subr.mxu0 0.0
        %666 = vmatpush1.msra.mxu0 0.0
        %667 = vmatprep.subr.mxu0 0.0
        %668 = vmatpush1.msra.mxu0 0.0
        %669 = vmatprep.subr.mxu0 0.0
        %670 = vmatpush1.msra.mxu0 0.0
        %671 = vmatprep.subr.mxu0 0.0
        %672 = vmatpush1.msra.mxu0 0.0
        %673 = vmatprep.subr.mxu0 0.0
        %674 = vmatpush1.msra.mxu0 0.0
        %675 = vmatprep.subr.mxu0 0.0
        %676 = vmatpush1.msra.mxu0 0.0
        %677 = vmatprep.subr.mxu0 0.0
        %678 = vmatpush1.msra.mxu0 0.0
        %679 = vmatprep.subr.mxu0 0.0
        %680 = vmatpush1.msra.mxu0 0.0
        %681 = vmatprep.subr.mxu0 0.0
        %682 = vmatpush1.msra.mxu0 0.0
        %683 = vmatprep.subr.mxu0 0.0
        %684 = vmatpush1.msra.mxu0 0.0
        %685 = vmatprep.subr.mxu0 0.0
        %686 = vmatpush1.msra.mxu0 0.0
        %687 = vmatprep.subr.mxu0 0.0
        %688 = vmatpush1.msra.mxu0 0.0
        %689 = vmatprep.subr.mxu0 0.0
        %690 = vmatpush1.msra.mxu0 0.0
        %691 = vmatprep.subr.mxu0 0.0
        %692 = vmatpush1.msra.mxu0 0.0
        %693 = vmatprep.mubr.f32.mxu0 0.0
        %v694 = vand.u32 %v247, 4294901760
        %v695 = vsub.f32 %v247, %v694
        %v696 = vand.u32 %v695, 4294901760
        %697 = vmatmul.mubr.f32.gmra.mrb[0].mxu0 %v696
        %v698 = vpop.f32.mrb[0].mxu0
        %v699 = vadd.f32 %v593, %v698
        %v700 = vpop.f32.mrb[0].mxu0
        %v701 = vadd.f32 %v595, %v700
        %702 = vmatprep.mubr.f32.mxu0 0.0
        %v703 = vand.u32 %v250, 4294901760
        %v704 = vsub.f32 %v250, %v703
        %v705 = vand.u32 %v704, 4294901760
        %706 = vmatmul.mubr.f32.gmra.mrb[0].mxu0 %v705
        %v707 = vpop.f32.mrb[0].mxu0
        %v708 = vadd.f32 %v601, %v707
        %v709 = vpop.f32.mrb[0].mxu0
        %v710 = vadd.f32 %v603, %v709
        %711 = vmatprep.mubr.f32.mxu0 0.0
        %v712 = vand.u32 %v253, 4294901760
        %v713 = vsub.f32 %v253, %v712
        %v714 = vand.u32 %v713, 4294901760
        %715 = vmatmul.mubr.f32.gmra.mrb[0].mxu0 %v714
        %v716 = vpop.f32.mrb[0].mxu0
        %v717 = vadd.f32 %v609, %v716
        %v718 = vpop.f32.mrb[0].mxu0
        %v719 = vadd.f32 %v611, %v718
        %720 = vmatprep.mubr.f32.mxu0 0.0
        %v721 = vand.u32 %v256, 4294901760
        %v722 = vsub.f32 %v256, %v721
        %v723 = vand.u32 %v722, 4294901760
        %724 = vmatmul.mubr.f32.gmra.mrb[0].mxu0 %v723
        %v725 = vpop.f32.mrb[0].mxu0
        %v726 = vadd.f32 %v617, %v725
        %v727 = vpop.f32.mrb[0].mxu0
        %v728 = vadd.f32 %v619, %v727
        %729 = vdwg.mxu0
        %v730 = vand.u32 %v210, 4294901760
        %v731 = vsub.f32 %v210, %v730
        %v732 = vand.u32 %v731, 4294901760
        %733 = vmatprep.subr.mxu0 %v732
        %v734 = vand.u32 %v209, 4294901760
        %v735 = vsub.f32 %v209, %v734
        %v736 = vand.u32 %v735, 4294901760
        %737 = vmatpush1.msra.mxu0 %v736
        %v738 = vand.u32 %v212, 4294901760
        %v739 = vsub.f32 %v212, %v738
        %v740 = vand.u32 %v739, 4294901760
        %741 = vmatprep.subr.mxu0 %v740
        %v742 = vand.u32 %v211, 4294901760
        %v743 = vsub.f32 %v211, %v742
        %v744 = vand.u32 %v743, 4294901760
        %745 = vmatpush1.msra.mxu0 %v744
        %v746 = vand.u32 %v214, 4294901760
        %v747 = vsub.f32 %v214, %v746
        %v748 = vand.u32 %v747, 4294901760
        %749 = vmatprep.subr.mxu0 %v748
        %v750 = vand.u32 %v213, 4294901760
        %v751 = vsub.f32 %v213, %v750
        %v752 = vand.u32 %v751, 4294901760
        %753 = vmatpush1.msra.mxu0 %v752
        %v754 = vand.u32 %v216, 4294901760
        %v755 = vsub.f32 %v216, %v754
        %v756 = vand.u32 %v755, 4294901760
        %757 = vmatprep.subr.mxu0 %v756
        %v758 = vand.u32 %v215, 4294901760
        %v759 = vsub.f32 %v215, %v758
        %v760 = vand.u32 %v759, 4294901760
        %761 = vmatpush1.msra.mxu0 %v760
        %762 = vmatprep.subr.mxu0 0.0
        %763 = vmatpush1.msra.mxu0 0.0
        %764 = vmatprep.subr.mxu0 0.0
        %765 = vmatpush1.msra.mxu0 0.0
        %766 = vmatprep.subr.mxu0 0.0
        %767 = vmatpush1.msra.mxu0 0.0
        %768 = vmatprep.subr.mxu0 0.0
        %769 = vmatpush1.msra.mxu0 0.0
        %770 = vmatprep.subr.mxu0 0.0
        %771 = vmatpush1.msra.mxu0 0.0
        %772 = vmatprep.subr.mxu0 0.0
        %773 = vmatpush1.msra.mxu0 0.0
        %774 = vmatprep.subr.mxu0 0.0
        %775 = vmatpush1.msra.mxu0 0.0
        %776 = vmatprep.subr.mxu0 0.0
        %777 = vmatpush1.msra.mxu0 0.0
        %778 = vmatprep.subr.mxu0 0.0
        %779 = vmatpush1.msra.mxu0 0.0
        %780 = vmatprep.subr.mxu0 0.0
        %781 = vmatpush1.msra.mxu0 0.0
        %782 = vmatprep.subr.mxu0 0.0
        %783 = vmatpush1.msra.mxu0 0.0
        %784 = vmatprep.subr.mxu0 0.0
        %785 = vmatpush1.msra.mxu0 0.0
        %786 = vmatprep.subr.mxu0 0.0
        %787 = vmatpush1.msra.mxu0 0.0
        %788 = vmatprep.subr.mxu0 0.0
        %789 = vmatpush1.msra.mxu0 0.0
        %790 = vmatprep.subr.mxu0 0.0
        %791 = vmatpush1.msra.mxu0 0.0
        %792 = vmatprep.subr.mxu0 0.0
        %793 = vmatpush1.msra.mxu0 0.0
        %794 = vmatprep.subr.mxu0 0.0
        %795 = vmatpush1.msra.mxu0 0.0
        %796 = vmatprep.subr.mxu0 0.0
        %797 = vmatpush1.msra.mxu0 0.0
        %798 = vmatprep.subr.mxu0 0.0
        %799 = vmatpush1.msra.mxu0 0.0
        %800 = vmatprep.subr.mxu0 0.0
        %801 = vmatpush1.msra.mxu0 0.0
        %802 = vmatprep.subr.mxu0 0.0
        %803 = vmatpush1.msra.mxu0 0.0
        %804 = vmatprep.subr.mxu0 0.0
        %805 = vmatpush1.msra.mxu0 0.0
        %806 = vmatprep.subr.mxu0 0.0
        %807 = vmatpush1.msra.mxu0 0.0
        %808 = vmatprep.subr.mxu0 0.0
        %809 = vmatpush1.msra.mxu0 0.0
        %810 = vmatprep.subr.mxu0 0.0
        %811 = vmatpush1.msra.mxu0 0.0
        %812 = vmatprep.subr.mxu0 0.0
        %813 = vmatpush1.msra.mxu0 0.0
        %814 = vmatprep.subr.mxu0 0.0
        %815 = vmatpush1.msra.mxu0 0.0
        %816 = vmatprep.subr.mxu0 0.0
        %817 = vmatpush1.msra.mxu0 0.0
        %818 = vmatprep.mubr.f32.mxu0 0.0
        %v819 = vand.u32 %v247, 4294901760
        %820 = vmatmul.mubr.f32.gmra.mrb[0].mxu0 %v819
        %v821 = vpop.f32.mrb[0].mxu0
        %v822 = vadd.f32 %v699, %v821
        %v823 = vpop.f32.mrb[0].mxu0
        %v824 = vadd.f32 %v701, %v823
        %825 = vmatprep.mubr.f32.mxu0 0.0
        %v826 = vand.u32 %v250, 4294901760
        %827 = vmatmul.mubr.f32.gmra.mrb[0].mxu0 %v826
        %v828 = vpop.f32.mrb[0].mxu0
        %v829 = vadd.f32 %v708, %v828
        %v830 = vpop.f32.mrb[0].mxu0
        %v831 = vadd.f32 %v710, %v830
        %832 = vmatprep.mubr.f32.mxu0 0.0
        %v833 = vand.u32 %v253, 4294901760
        %834 = vmatmul.mubr.f32.gmra.mrb[0].mxu0 %v833
        %v835 = vpop.f32.mrb[0].mxu0
        %v836 = vadd.f32 %v717, %v835
        %v837 = vpop.f32.mrb[0].mxu0
        %v838 = vadd.f32 %v719, %v837
        %839 = vmatprep.mubr.f32.mxu0 0.0
        %v840 = vand.u32 %v256, 4294901760
        %841 = vmatmul.mubr.f32.gmra.mrb[0].mxu0 %v840
        %v842 = vpop.f32.mrb[0].mxu0
        %v843 = vadd.f32 %v726, %v842
        %v844 = vpop.f32.mrb[0].mxu0
        %v845 = vadd.f32 %v728, %v844
        %846 = vdwg.mxu0
        %v847 = vand.u32 %v210, 4294901760
        %848 = vmatprep.subr.mxu0 %v847
        %v849 = vand.u32 %v209, 4294901760
        %850 = vmatpush1.msra.mxu0 %v849
        %v851 = vand.u32 %v212, 4294901760
        %852 = vmatprep.subr.mxu0 %v851
        %v853 = vand.u32 %v211, 4294901760
        %854 = vmatpush1.msra.mxu0 %v853
        %v855 = vand.u32 %v214, 4294901760
        %856 = vmatprep.subr.mxu0 %v855
        %v857 = vand.u32 %v213, 4294901760
        %858 = vmatpush1.msra.mxu0 %v857
        %v859 = vand.u32 %v216, 4294901760
        %860 = vmatprep.subr.mxu0 %v859
        %v861 = vand.u32 %v215, 4294901760
        %862 = vmatpush1.msra.mxu0 %v861
        %863 = vmatprep.subr.mxu0 0.0
        %864 = vmatpush1.msra.mxu0 0.0
        %865 = vmatprep.subr.mxu0 0.0
        %866 = vmatpush1.msra.mxu0 0.0
        %867 = vmatprep.subr.mxu0 0.0
        %868 = vmatpush1.msra.mxu0 0.0
        %869 = vmatprep.subr.mxu0 0.0
        %870 = vmatpush1.msra.mxu0 0.0
        %871 = vmatprep.subr.mxu0 0.0
        %872 = vmatpush1.msra.mxu0 0.0
        %873 = vmatprep.subr.mxu0 0.0
        %874 = vmatpush1.msra.mxu0 0.0
        %875 = vmatprep.subr.mxu0 0.0
        %876 = vmatpush1.msra.mxu0 0.0
        %877 = vmatprep.subr.mxu0 0.0
        %878 = vmatpush1.msra.mxu0 0.0
        %879 = vmatprep.subr.mxu0 0.0
        %880 = vmatpush1.msra.mxu0 0.0
        %881 = vmatprep.subr.mxu0 0.0
        %882 = vmatpush1.msra.mxu0 0.0
        %883 = vmatprep.subr.mxu0 0.0
        %884 = vmatpush1.msra.mxu0 0.0
        %885 = vmatprep.subr.mxu0 0.0
        %886 = vmatpush1.msra.mxu0 0.0
        %887 = vmatprep.subr.mxu0 0.0
        %888 = vmatpush1.msra.mxu0 0.0
        %889 = vmatprep.subr.mxu0 0.0
        %890 = vmatpush1.msra.mxu0 0.0
        %891 = vmatprep.subr.mxu0 0.0
        %892 = vmatpush1.msra.mxu0 0.0
        %893 = vmatprep.subr.mxu0 0.0
        %894 = vmatpush1.msra.mxu0 0.0
        %895 = vmatprep.subr.mxu0 0.0
        %896 = vmatpush1.msra.mxu0 0.0
        %897 = vmatprep.subr.mxu0 0.0
        %898 = vmatpush1.msra.mxu0 0.0
        %899 = vmatprep.subr.mxu0 0.0
        %900 = vmatpush1.msra.mxu0 0.0
        %901 = vmatprep.subr.mxu0 0.0
        %902 = vmatpush1.msra.mxu0 0.0
        %903 = vmatprep.subr.mxu0 0.0
        %904 = vmatpush1.msra.mxu0 0.0
        %905 = vmatprep.subr.mxu0 0.0
        %906 = vmatpush1.msra.mxu0 0.0
        %907 = vmatprep.subr.mxu0 0.0
        %908 = vmatpush1.msra.mxu0 0.0
        %909 = vmatprep.subr.mxu0 0.0
        %910 = vmatpush1.msra.mxu0 0.0
        %911 = vmatprep.subr.mxu0 0.0
        %912 = vmatpush1.msra.mxu0 0.0
        %913 = vmatprep.subr.mxu0 0.0
        %914 = vmatpush1.msra.mxu0 0.0
        %915 = vmatprep.subr.mxu0 0.0
        %916 = vmatpush1.msra.mxu0 0.0
        %917 = vmatprep.subr.mxu0 0.0
        %918 = vmatpush1.msra.mxu0 0.0
        %919 = vmatprep.mubr.f32.mxu0 0.0
        %v920 = vand.u32 %v247, 4294901760
        %921 = vmatmul.mubr.f32.gmra.mrb[0].mxu0 %v920
        %v922 = vpop.f32.mrb[0].mxu0
        %v923 = vadd.f32 %v822, %v922
        %v924 = vpop.f32.mrb[0].mxu0
        %v925 = vadd.f32 %v824, %v924
        %926 = vmatprep.mubr.f32.mxu0 0.0
        %v927 = vand.u32 %v250, 4294901760
        %928 = vmatmul.mubr.f32.gmra.mrb[0].mxu0 %v927
        %v929 = vpop.f32.mrb[0].mxu0
        %v930 = vadd.f32 %v829, %v929
        %v931 = vpop.f32.mrb[0].mxu0
        %v932 = vadd.f32 %v831, %v931
        %933 = vmatprep.mubr.f32.mxu0 0.0
        %v934 = vand.u32 %v253, 4294901760
        %935 = vmatmul.mubr.f32.gmra.mrb[0].mxu0 %v934
        %v936 = vpop.f32.mrb[0].mxu0
        %v937 = vadd.f32 %v836, %v936
        %v938 = vpop.f32.mrb[0].mxu0
        %v939 = vadd.f32 %v838, %v938
        %940 = vmatprep.mubr.f32.mxu0 0.0
        %v941 = vand.u32 %v256, 4294901760
        %942 = vmatmul.mubr.f32.gmra.mrb[0].mxu0 %v941
        %v943 = vpop.f32.mrb[0].mxu0
        %v944 = vadd.f32 %v843, %v943
        %v945 = vpop.f32.mrb[0].mxu0
        %v946 = vadd.f32 %v845, %v945
        %947 = vdwg.mxu0
        %v948 = vmax.f32 %v923, 0.0
        %v949 = vmax.f32 %v925, 0.0
        %v950 = vmax.f32 %v930, 0.0
        %v951 = vmax.f32 %v932, 0.0
        %v952 = vmax.f32 %v937, 0.0
        %v953 = vmax.f32 %v939, 0.0
        %v954 = vmax.f32 %v944, 0.0
        %v955 = vmax.f32 %v946, 0.0
        %v956 = vadd.f32 %v948, %v209
        %v957 = vadd.f32 %v949, %v210
        %v958 = vadd.f32 %v950, %v211
        %v959 = vadd.f32 %v951, %v212
        %v960 = vadd.f32 %v952, %v213
        %v961 = vadd.f32 %v953, %v214
        %v962 = vadd.f32 %v954, %v215
        %v963 = vadd.f32 %v955, %v216
        %v964 = vand.u32 %v957, 4294901760
        %965 = vmatprep.subr.mxu0 %v964
        %v966 = vand.u32 %v956, 4294901760
        %967 = vmatpush1.msra.mxu0 %v966
        %v968 = vand.u32 %v959, 4294901760
        %969 = vmatprep.subr.mxu0 %v968
        %v970 = vand.u32 %v958, 4294901760
        %971 = vmatpush1.msra.mxu0 %v970
        %v972 = vand.u32 %v961, 4294901760
        %973 = vmatprep.subr.mxu0 %v972
        %v974 = vand.u32 %v960, 4294901760
        %975 = vmatpush1.msra.mxu0 %v974
        %v976 = vand.u32 %v963, 4294901760
        %977 = vmatprep.subr.mxu0 %v976
        %v978 = vand.u32 %v962, 4294901760
        %979 = vmatpush1.msra.mxu0 %v978
        %980 = vmatprep.subr.mxu0 0.0
        %981 = vmatpush1.msra.mxu0 0.0
        %982 = vmatprep.subr.mxu0 0.0
        %983 = vmatpush1.msra.mxu0 0.0
        %984 = vmatprep.subr.mxu0 0.0
        %985 = vmatpush1.msra.mxu0 0.0
        %986 = vmatprep.subr.mxu0 0.0
        %987 = vmatpush1.msra.mxu0 0.0
        %988 = vmatprep.subr.mxu0 0.0
        %989 = vmatpush1.msra.mxu0 0.0
        %990 = vmatprep.subr.mxu0 0.0
        %991 = vmatpush1.msra.mxu0 0.0
        %992 = vmatprep.subr.mxu0 0.0
        %993 = vmatpush1.msra.mxu0 0.0
        %994 = vmatprep.subr.mxu0 0.0
        %995 = vmatpush1.msra.mxu0 0.0
        %996 = vmatprep.subr.mxu0 0.0
        %997 = vmatpush1.msra.mxu0 0.0
        %998 = vmatprep.subr.mxu0 0.0
        %999 = vmatpush1.msra.mxu0 0.0
        %1000 = vmatprep.subr.mxu0 0.0
        %1001 = vmatpush1.msra.mxu0 0.0
        %1002 = vmatprep.subr.mxu0 0.0
        %1003 = vmatpush1.msra.mxu0 0.0
        %1004 = vmatprep.subr.mxu0 0.0
        %1005 = vmatpush1.msra.mxu0 0.0
        %1006 = vmatprep.subr.mxu0 0.0
        %1007 = vmatpush1.msra.mxu0 0.0
        %1008 = vmatprep.subr.mxu0 0.0
        %1009 = vmatpush1.msra.mxu0 0.0
        %1010 = vmatprep.subr.mxu0 0.0
        %1011 = vmatpush1.msra.mxu0 0.0
        %1012 = vmatprep.subr.mxu0 0.0
        %1013 = vmatpush1.msra.mxu0 0.0
        %1014 = vmatprep.subr.mxu0 0.0
        %1015 = vmatpush1.msra.mxu0 0.0
        %1016 = vmatprep.subr.mxu0 0.0
        %1017 = vmatpush1.msra.mxu0 0.0
        %1018 = vmatprep.subr.mxu0 0.0
        %1019 = vmatpush1.msra.mxu0 0.0
        %1020 = vmatprep.subr.mxu0 0.0
        %1021 = vmatpush1.msra.mxu0 0.0
        %1022 = vmatprep.subr.mxu0 0.0
        %1023 = vmatpush1.msra.mxu0 0.0
        %1024 = vmatprep.subr.mxu0 0.0
        %1025 = vmatpush1.msra.mxu0 0.0
        %1026 = vmatprep.subr.mxu0 0.0
        %1027 = vmatpush1.msra.mxu0 0.0
        %1028 = vmatprep.subr.mxu0 0.0
        %1029 = vmatpush1.msra.mxu0 0.0
        %1030 = vmatprep.subr.mxu0 0.0
        %1031 = vmatpush1.msra.mxu0 0.0
        %1032 = vmatprep.subr.mxu0 0.0
        %1033 = vmatpush1.msra.mxu0 0.0
        %1034 = vmatprep.subr.mxu0 0.0
        %1035 = vmatpush1.msra.mxu0 0.0
        %1036 = vmatprep.mubr.f32.mxu0 0.0
        %v1037 = vand.u32 %v247, 4294901760
        %v1038 = vsub.f32 %v247, %v1037
        %v1039 = vand.u32 %v1038, 4294901760
        %v1040 = vsub.f32 %v1038, %v1039
        %v1041 = vand.u32 %v1040, 4294901760
        %1042 = vmatmul.mubr.f32.gmra.mrb[0].mxu0 %v1041
        %v1043 = vpop.f32.mrb[0].mxu0
        %v1044 = vadd.f32 %v228, %v1043
        %v1045 = vpop.f32.mrb[0].mxu0
        %v1046 = vadd.f32 %v228, %v1045
        %1047 = vmatprep.mubr.f32.mxu0 0.0
        %v1048 = vand.u32 %v250, 4294901760
        %v1049 = vsub.f32 %v250, %v1048
        %v1050 = vand.u32 %v1049, 4294901760
        %v1051 = vsub.f32 %v1049, %v1050
        %v1052 = vand.u32 %v1051, 4294901760
        %1053 = vmatmul.mubr.f32.gmra.mrb[0].mxu0 %v1052
        %v1054 = vpop.f32.mrb[0].mxu0
        %v1055 = vadd.f32 %v233, %v1054
        %v1056 = vpop.f32.mrb[0].mxu0
        %v1057 = vadd.f32 %v233, %v1056
        %1058 = vmatprep.mubr.f32.mxu0 0.0
        %v1059 = vand.u32 %v253, 4294901760
        %v1060 = vsub.f32 %v253, %v1059
        %v1061 = vand.u32 %v1060, 4294901760
        %v1062 = vsub.f32 %v1060, %v1061
        %v1063 = vand.u32 %v1062, 4294901760
        %1064 = vmatmul.mubr.f32.gmra.mrb[0].mxu0 %v1063
        %v1065 = vpop.f32.mrb[0].mxu0
        %v1066 = vadd.f32 %v238, %v1065
        %v1067 = vpop.f32.mrb[0].mxu0
        %v1068 = vadd.f32 %v238, %v1067
        %1069 = vmatprep.mubr.f32.mxu0 0.0
        %v1070 = vand.u32 %v256, 4294901760
        %v1071 = vsub.f32 %v256, %v1070
        %v1072 = vand.u32 %v1071, 4294901760
        %v1073 = vsub.f32 %v1071, %v1072
        %v1074 = vand.u32 %v1073, 4294901760
        %1075 = vmatmul.mubr.f32.gmra.mrb[0].mxu0 %v1074
        %v1076 = vpop.f32.mrb[0].mxu0
        %v1077 = vadd.f32 %v243, %v1076
        %v1078 = vpop.f32.mrb[0].mxu0
        %v1079 = vadd.f32 %v243, %v1078
        %1080 = vdwg.mxu0
        %v1081 = vand.u32 %v957, 4294901760
        %v1082 = vsub.f32 %v957, %v1081
        %v1083 = vand.u32 %v1082, 4294901760
        %v1084 = vsub.f32 %v1082, %v1083
        %v1085 = vand.u32 %v1084, 4294901760
        %1086 = vmatprep.subr.mxu0 %v1085
        %v1087 = vand.u32 %v956, 4294901760
        %v1088 = vsub.f32 %v956, %v1087
        %v1089 = vand.u32 %v1088, 4294901760
        %v1090 = vsub.f32 %v1088, %v1089
        %v1091 = vand.u32 %v1090, 4294901760
        %1092 = vmatpush1.msra.mxu0 %v1091
        %v1093 = vand.u32 %v959, 4294901760
        %v1094 = vsub.f32 %v959, %v1093
        %v1095 = vand.u32 %v1094, 4294901760
        %v1096 = vsub.f32 %v1094, %v1095
        %v1097 = vand.u32 %v1096, 4294901760
        %1098 = vmatprep.subr.mxu0 %v1097
        %v1099 = vand.u32 %v958, 4294901760
        %v1100 = vsub.f32 %v958, %v1099
        %v1101 = vand.u32 %v1100, 4294901760
        %v1102 = vsub.f32 %v1100, %v1101
        %v1103 = vand.u32 %v1102, 4294901760
        %1104 = vmatpush1.msra.mxu0 %v1103
        %v1105 = vand.u32 %v961, 4294901760
        %v1106 = vsub.f32 %v961, %v1105
        %v1107 = vand.u32 %v1106, 4294901760
        %v1108 = vsub.f32 %v1106, %v1107
        %v1109 = vand.u32 %v1108, 4294901760
        %1110 = vmatprep.subr.mxu0 %v1109
        %v1111 = vand.u32 %v960, 4294901760
        %v1112 = vsub.f32 %v960, %v1111
        %v1113 = vand.u32 %v1112, 4294901760
        %v1114 = vsub.f32 %v1112, %v1113
        %v1115 = vand.u32 %v1114, 4294901760
        %1116 = vmatpush1.msra.mxu0 %v1115
        %v1117 = vand.u32 %v963, 4294901760
        %v1118 = vsub.f32 %v963, %v1117
        %v1119 = vand.u32 %v1118, 4294901760
        %v1120 = vsub.f32 %v1118, %v1119
        %v1121 = vand.u32 %v1120, 4294901760
        %1122 = vmatprep.subr.mxu0 %v1121
        %v1123 = vand.u32 %v962, 4294901760
        %v1124 = vsub.f32 %v962, %v1123
        %v1125 = vand.u32 %v1124, 4294901760
        %v1126 = vsub.f32 %v1124, %v1125
        %v1127 = vand.u32 %v1126, 4294901760
        %1128 = vmatpush1.msra.mxu0 %v1127
        %1129 = vmatprep.subr.mxu0 0.0
        %1130 = vmatpush1.msra.mxu0 0.0
        %1131 = vmatprep.subr.mxu0 0.0
        %1132 = vmatpush1.msra.mxu0 0.0
        %1133 = vmatprep.subr.mxu0 0.0
        %1134 = vmatpush1.msra.mxu0 0.0
        %1135 = vmatprep.subr.mxu0 0.0
        %1136 = vmatpush1.msra.mxu0 0.0
        %1137 = vmatprep.subr.mxu0 0.0
        %1138 = vmatpush1.msra.mxu0 0.0
        %1139 = vmatprep.subr.mxu0 0.0
        %1140 = vmatpush1.msra.mxu0 0.0
        %1141 = vmatprep.subr.mxu0 0.0
        %1142 = vmatpush1.msra.mxu0 0.0
        %1143 = vmatprep.subr.mxu0 0.0
        %1144 = vmatpush1.msra.mxu0 0.0
        %1145 = vmatprep.subr.mxu0 0.0
        %1146 = vmatpush1.msra.mxu0 0.0
        %1147 = vmatprep.subr.mxu0 0.0
        %1148 = vmatpush1.msra.mxu0 0.0
        %1149 = vmatprep.subr.mxu0 0.0
        %1150 = vmatpush1.msra.mxu0 0.0
        %1151 = vmatprep.subr.mxu0 0.0
        %1152 = vmatpush1.msra.mxu0 0.0
        %1153 = vmatprep.subr.mxu0 0.0
        %1154 = vmatpush1.msra.mxu0 0.0
        %1155 = vmatprep.subr.mxu0 0.0
        %1156 = vmatpush1.msra.mxu0 0.0
        %1157 = vmatprep.subr.mxu0 0.0
        %1158 = vmatpush1.msra.mxu0 0.0
        %1159 = vmatprep.subr.mxu0 0.0
        %1160 = vmatpush1.msra.mxu0 0.0
        %1161 = vmatprep.subr.mxu0 0.0
        %1162 = vmatpush1.msra.mxu0 0.0
        %1163 = vmatprep.subr.mxu0 0.0
        %1164 = vmatpush1.msra.mxu0 0.0
        %1165 = vmatprep.subr.mxu0 0.0
        %1166 = vmatpush1.msra.mxu0 0.0
        %1167 = vmatprep.subr.mxu0 0.0
        %1168 = vmatpush1.msra.mxu0 0.0
        %1169 = vmatprep.subr.mxu0 0.0
        %1170 = vmatpush1.msra.mxu0 0.0
        %1171 = vmatprep.subr.mxu0 0.0
        %1172 = vmatpush1.msra.mxu0 0.0
        %1173 = vmatprep.subr.mxu0 0.0
        %1174 = vmatpush1.msra.mxu0 0.0
        %1175 = vmatprep.subr.mxu0 0.0
        %1176 = vmatpush1.msra.mxu0 0.0
        %1177 = vmatprep.subr.mxu0 0.0
        %1178 = vmatpush1.msra.mxu0 0.0
        %1179 = vmatprep.subr.mxu0 0.0
        %1180 = vmatpush1.msra.mxu0 0.0
        %1181 = vmatprep.subr.mxu0 0.0
        %1182 = vmatpush1.msra.mxu0 0.0
        %1183 = vmatprep.subr.mxu0 0.0
        %1184 = vmatpush1.msra.mxu0 0.0
        %1185 = vmatprep.mubr.f32.mxu0 0.0
        %v1186 = vand.u32 %v247, 4294901760
        %1187 = vmatmul.mubr.f32.gmra.mrb[0].mxu0 %v1186
        %v1188 = vpop.f32.mrb[0].mxu0
        %v1189 = vadd.f32 %v1044, %v1188
        %v1190 = vpop.f32.mrb[0].mxu0
        %v1191 = vadd.f32 %v1046, %v1190
        %1192 = vmatprep.mubr.f32.mxu0 0.0
        %v1193 = vand.u32 %v250, 4294901760
        %1194 = vmatmul.mubr.f32.gmra.mrb[0].mxu0 %v1193
        %v1195 = vpop.f32.mrb[0].mxu0
        %v1196 = vadd.f32 %v1055, %v1195
        %v1197 = vpop.f32.mrb[0].mxu0
        %v1198 = vadd.f32 %v1057, %v1197
        %1199 = vmatprep.mubr.f32.mxu0 0.0
        %v1200 = vand.u32 %v253, 4294901760
        %1201 = vmatmul.mubr.f32.gmra.mrb[0].mxu0 %v1200
        %v1202 = vpop.f32.mrb[0].mxu0
        %v1203 = vadd.f32 %v1066, %v1202
        %v1204 = vpop.f32.mrb[0].mxu0
        %v1205 = vadd.f32 %v1068, %v1204
        %1206 = vmatprep.mubr.f32.mxu0 0.0
        %v1207 = vand.u32 %v256, 4294901760
        %1208 = vmatmul.mubr.f32.gmra.mrb[0].mxu0 %v1207
        %v1209 = vpop.f32.mrb[0].mxu0
        %v1210 = vadd.f32 %v1077, %v1209
        %v1211 = vpop.f32.mrb[0].mxu0
        %v1212 = vadd.f32 %v1079, %v1211
        %1213 = vdwg.mxu0
        %v1214 = vand.u32 %v957, 4294901760
        %v1215 = vsub.f32 %v957, %v1214
        %1216 = vmatprep.subr.mxu0 %v1215
        %v1217 = vand.u32 %v956, 4294901760
        %v1218 = vsub.f32 %v956, %v1217
        %1219 = vmatpush1.msra.mxu0 %v1218
        %v1220 = vand.u32 %v959, 4294901760
        %v1221 = vsub.f32 %v959, %v1220
        %1222 = vmatprep.subr.mxu0 %v1221
        %v1223 = vand.u32 %v958, 4294901760
        %v1224 = vsub.f32 %v958, %v1223
        %1225 = vmatpush1.msra.mxu0 %v1224
        %v1226 = vand.u32 %v961, 4294901760
        %v1227 = vsub.f32 %v961, %v1226
        %1228 = vmatprep.subr.mxu0 %v1227
        %v1229 = vand.u32 %v960, 4294901760
        %v1230 = vsub.f32 %v960, %v1229
        %1231 = vmatpush1.msra.mxu0 %v1230
        %v1232 = vand.u32 %v963, 4294901760
        %v1233 = vsub.f32 %v963, %v1232
        %1234 = vmatprep.subr.mxu0 %v1233
        %v1235 = vand.u32 %v962, 4294901760
        %v1236 = vsub.f32 %v962, %v1235
        %1237 = vmatpush1.msra.mxu0 %v1236
        %1238 = vmatprep.subr.mxu0 0.0
        %1239 = vmatpush1.msra.mxu0 0.0
        %1240 = vmatprep.subr.mxu0 0.0
        %1241 = vmatpush1.msra.mxu0 0.0
        %1242 = vmatprep.subr.mxu0 0.0
        %1243 = vmatpush1.msra.mxu0 0.0
        %1244 = vmatprep.subr.mxu0 0.0
        %1245 = vmatpush1.msra.mxu0 0.0
        %1246 = vmatprep.subr.mxu0 0.0
        %1247 = vmatpush1.msra.mxu0 0.0
        %1248 = vmatprep.subr.mxu0 0.0
        %1249 = vmatpush1.msra.mxu0 0.0
        %1250 = vmatprep.subr.mxu0 0.0
        %1251 = vmatpush1.msra.mxu0 0.0
        %1252 = vmatprep.subr.mxu0 0.0
        %1253 = vmatpush1.msra.mxu0 0.0
        %1254 = vmatprep.subr.mxu0 0.0
        %1255 = vmatpush1.msra.mxu0 0.0
        %1256 = vmatprep.subr.mxu0 0.0
        %1257 = vmatpush1.msra.mxu0 0.0
        %1258 = vmatprep.subr.mxu0 0.0
        %1259 = vmatpush1.msra.mxu0 0.0
        %1260 = vmatprep.subr.mxu0 0.0
        %1261 = vmatpush1.msra.mxu0 0.0
        %1262 = vmatprep.subr.mxu0 0.0
        %1263 = vmatpush1.msra.mxu0 0.0
        %1264 = vmatprep.subr.mxu0 0.0
        %1265 = vmatpush1.msra.mxu0 0.0
        %1266 = vmatprep.subr.mxu0 0.0
        %1267 = vmatpush1.msra.mxu0 0.0
        %1268 = vmatprep.subr.mxu0 0.0
        %1269 = vmatpush1.msra.mxu0 0.0
        %1270 = vmatprep.subr.mxu0 0.0
        %1271 = vmatpush1.msra.mxu0 0.0
        %1272 = vmatprep.subr.mxu0 0.0
        %1273 = vmatpush1.msra.mxu0 0.0
        %1274 = vmatprep.subr.mxu0 0.0
        %1275 = vmatpush1.msra.mxu0 0.0
        %1276 = vmatprep.subr.mxu0 0.0
        %1277 = vmatpush1.msra.mxu0 0.0
        %1278 = vmatprep.subr.mxu0 0.0
        %1279 = vmatpush1.msra.mxu0 0.0
        %1280 = vmatprep.subr.mxu0 0.0
        %1281 = vmatpush1.msra.mxu0 0.0
        %1282 = vmatprep.subr.mxu0 0.0
        %1283 = vmatpush1.msra.mxu0 0.0
        %1284 = vmatprep.subr.mxu0 0.0
        %1285 = vmatpush1.msra.mxu0 0.0
        %1286 = vmatprep.subr.mxu0 0.0
        %1287 = vmatpush1.msra.mxu0 0.0
        %1288 = vmatprep.subr.mxu0 0.0
        %1289 = vmatpush1.msra.mxu0 0.0
        %1290 = vmatprep.subr.mxu0 0.0
        %1291 = vmatpush1.msra.mxu0 0.0
        %1292 = vmatprep.subr.mxu0 0.0
        %1293 = vmatpush1.msra.mxu0 0.0
        %1294 = vmatprep.mubr.f32.mxu0 0.0
        %v1295 = vand.u32 %v247, 4294901760
        %v1296 = vsub.f32 %v247, %v1295
        %1297 = vmatmul.mubr.f32.gmra.mrb[0].mxu0 %v1296
        %v1298 = vpop.f32.mrb[0].mxu0
        %v1299 = vadd.f32 %v1189, %v1298
        %v1300 = vpop.f32.mrb[0].mxu0
        %v1301 = vadd.f32 %v1191, %v1300
        %1302 = vmatprep.mubr.f32.mxu0 0.0
        %v1303 = vand.u32 %v250, 4294901760
        %v1304 = vsub.f32 %v250, %v1303
        %1305 = vmatmul.mubr.f32.gmra.mrb[0].mxu0 %v1304
        %v1306 = vpop.f32.mrb[0].mxu0
        %v1307 = vadd.f32 %v1196, %v1306
        %v1308 = vpop.f32.mrb[0].mxu0
        %v1309 = vadd.f32 %v1198, %v1308
        %1310 = vmatprep.mubr.f32.mxu0 0.0
        %v1311 = vand.u32 %v253, 4294901760
        %v1312 = vsub.f32 %v253, %v1311
        %1313 = vmatmul.mubr.f32.gmra.mrb[0].mxu0 %v1312
        %v1314 = vpop.f32.mrb[0].mxu0
        %v1315 = vadd.f32 %v1203, %v1314
        %v1316 = vpop.f32.mrb[0].mxu0
        %v1317 = vadd.f32 %v1205, %v1316
        %1318 = vmatprep.mubr.f32.mxu0 0.0
        %v1319 = vand.u32 %v256, 4294901760
        %v1320 = vsub.f32 %v256, %v1319
        %1321 = vmatmul.mubr.f32.gmra.mrb[0].mxu0 %v1320
        %v1322 = vpop.f32.mrb[0].mxu0
        %v1323 = vadd.f32 %v1210, %v1322
        %v1324 = vpop.f32.mrb[0].mxu0
        %v1325 = vadd.f32 %v1212, %v1324
        %1326 = vdwg.mxu0
        %v1327 = vand.u32 %v957, 4294901760
        %1328 = vmatprep.subr.mxu0 %v1327
        %v1329 = vand.u32 %v956, 4294901760
        %1330 = vmatpush1.msra.mxu0 %v1329
        %v1331 = vand.u32 %v959, 4294901760
        %1332 = vmatprep.subr.mxu0 %v1331
        %v1333 = vand.u32 %v958, 4294901760
        %1334 = vmatpush1.msra.mxu0 %v1333
        %v1335 = vand.u32 %v961, 4294901760
        %1336 = vmatprep.subr.mxu0 %v1335
        %v1337 = vand.u32 %v960, 4294901760
        %1338 = vmatpush1.msra.mxu0 %v1337
        %v1339 = vand.u32 %v963, 4294901760
        %1340 = vmatprep.subr.mxu0 %v1339
        %v1341 = vand.u32 %v962, 4294901760
        %1342 = vmatpush1.msra.mxu0 %v1341
        %1343 = vmatprep.subr.mxu0 0.0
        %1344 = vmatpush1.msra.mxu0 0.0
        %1345 = vmatprep.subr.mxu0 0.0
        %1346 = vmatpush1.msra.mxu0 0.0
        %1347 = vmatprep.subr.mxu0 0.0
        %1348 = vmatpush1.msra.mxu0 0.0
        %1349 = vmatprep.subr.mxu0 0.0
        %1350 = vmatpush1.msra.mxu0 0.0
        %1351 = vmatprep.subr.mxu0 0.0
        %1352 = vmatpush1.msra.mxu0 0.0
        %1353 = vmatprep.subr.mxu0 0.0
        %1354 = vmatpush1.msra.mxu0 0.0
        %1355 = vmatprep.subr.mxu0 0.0
        %1356 = vmatpush1.msra.mxu0 0.0
        %1357 = vmatprep.subr.mxu0 0.0
        %1358 = vmatpush1.msra.mxu0 0.0
        %1359 = vmatprep.subr.mxu0 0.0
        %1360 = vmatpush1.msra.mxu0 0.0
        %1361 = vmatprep.subr.mxu0 0.0
        %1362 = vmatpush1.msra.mxu0 0.0
        %1363 = vmatprep.subr.mxu0 0.0
        %1364 = vmatpush1.msra.mxu0 0.0
        %1365 = vmatprep.subr.mxu0 0.0
        %1366 = vmatpush1.msra.mxu0 0.0
        %1367 = vmatprep.subr.mxu0 0.0
        %1368 = vmatpush1.msra.mxu0 0.0
        %1369 = vmatprep.subr.mxu0 0.0
        %1370 = vmatpush1.msra.mxu0 0.0
        %1371 = vmatprep.subr.mxu0 0.0
        %1372 = vmatpush1.msra.mxu0 0.0
        %1373 = vmatprep.subr.mxu0 0.0
        %1374 = vmatpush1.msra.mxu0 0.0
        %1375 = vmatprep.subr.mxu0 0.0
        %1376 = vmatpush1.msra.mxu0 0.0
        %1377 = vmatprep.subr.mxu0 0.0
        %1378 = vmatpush1.msra.mxu0 0.0
        %1379 = vmatprep.subr.mxu0 0.0
        %1380 = vmatpush1.msra.mxu0 0.0
        %1381 = vmatprep.subr.mxu0 0.0
        %1382 = vmatpush1.msra.mxu0 0.0
        %1383 = vmatprep.subr.mxu0 0.0
        %1384 = vmatpush1.msra.mxu0 0.0
        %1385 = vmatprep.subr.mxu0 0.0
        %1386 = vmatpush1.msra.mxu0 0.0
        %1387 = vmatprep.subr.mxu0 0.0
        %1388 = vmatpush1.msra.mxu0 0.0
        %1389 = vmatprep.subr.mxu0 0.0
        %1390 = vmatpush1.msra.mxu0 0.0
        %1391 = vmatprep.subr.mxu0 0.0
        %1392 = vmatpush1.msra.mxu0 0.0
        %1393 = vmatprep.subr.mxu0 0.0
        %1394 = vmatpush1.msra.mxu0 0.0
        %1395 = vmatprep.subr.mxu0 0.0
        %1396 = vmatpush1.msra.mxu0 0.0
        %1397 = vmatprep.subr.mxu0 0.0
        %1398 = vmatpush1.msra.mxu0 0.0
        %1399 = vmatprep.mubr.f32.mxu0 0.0
        %v1400 = vand.u32 %v247, 4294901760
        %v1401 = vsub.f32 %v247, %v1400
        %v1402 = vand.u32 %v1401, 4294901760
        %1403 = vmatmul.mubr.f32.gmra.mrb[0].mxu0 %v1402
        %v1404 = vpop.f32.mrb[0].mxu0
        %v1405 = vadd.f32 %v1299, %v1404
        %v1406 = vpop.f32.mrb[0].mxu0
        %v1407 = vadd.f32 %v1301, %v1406
        %1408 = vmatprep.mubr.f32.mxu0 0.0
        %v1409 = vand.u32 %v250, 4294901760
        %v1410 = vsub.f32 %v250, %v1409
        %v1411 = vand.u32 %v1410, 4294901760
        %1412 = vmatmul.mubr.f32.gmra.mrb[0].mxu0 %v1411
        %v1413 = vpop.f32.mrb[0].mxu0
        %v1414 = vadd.f32 %v1307, %v1413
        %v1415 = vpop.f32.mrb[0].mxu0
        %v1416 = vadd.f32 %v1309, %v1415
        %1417 = vmatprep.mubr.f32.mxu0 0.0
        %v1418 = vand.u32 %v253, 4294901760
        %v1419 = vsub.f32 %v253, %v1418
        %v1420 = vand.u32 %v1419, 4294901760
        %1421 = vmatmul.mubr.f32.gmra.mrb[0].mxu0 %v1420
        %v1422 = vpop.f32.mrb[0].mxu0
        %v1423 = vadd.f32 %v1315, %v1422
        %v1424 = vpop.f32.mrb[0].mxu0
        %v1425 = vadd.f32 %v1317, %v1424
        %1426 = vmatprep.mubr.f32.mxu0 0.0
        %v1427 = vand.u32 %v256, 4294901760
        %v1428 = vsub.f32 %v256, %v1427
        %v1429 = vand.u32 %v1428, 4294901760
        %1430 = vmatmul.mubr.f32.gmra.mrb[0].mxu0 %v1429
        %v1431 = vpop.f32.mrb[0].mxu0
        %v1432 = vadd.f32 %v1323, %v1431
        %v1433 = vpop.f32.mrb[0].mxu0
        %v1434 = vadd.f32 %v1325, %v1433
        %1435 = vdwg.mxu0
        %v1436 = vand.u32 %v957, 4294901760
        %v1437 = vsub.f32 %v957, %v1436
        %v1438 = vand.u32 %v1437, 4294901760
        %1439 = vmatprep.subr.mxu0 %v1438
        %v1440 = vand.u32 %v956, 4294901760
        %v1441 = vsub.f32 %v956, %v1440
        %v1442 = vand.u32 %v1441, 4294901760
        %1443 = vmatpush1.msra.mxu0 %v1442
        %v1444 = vand.u32 %v959, 4294901760
        %v1445 = vsub.f32 %v959, %v1444
        %v1446 = vand.u32 %v1445, 4294901760
        %1447 = vmatprep.subr.mxu0 %v1446
        %v1448 = vand.u32 %v958, 4294901760
        %v1449 = vsub.f32 %v958, %v1448
        %v1450 = vand.u32 %v1449, 4294901760
        %1451 = vmatpush1.msra.mxu0 %v1450
        %v1452 = vand.u32 %v961, 4294901760
        %v1453 = vsub.f32 %v961, %v1452
        %v1454 = vand.u32 %v1453, 4294901760
        %1455 = vmatprep.subr.mxu0 %v1454
        %v1456 = vand.u32 %v960, 4294901760
        %v1457 = vsub.f32 %v960, %v1456
        %v1458 = vand.u32 %v1457, 4294901760
        %1459 = vmatpush1.msra.mxu0 %v1458
        %v1460 = vand.u32 %v963, 4294901760
        %v1461 = vsub.f32 %v963, %v1460
        %v1462 = vand.u32 %v1461, 4294901760
        %1463 = vmatprep.subr.mxu0 %v1462
        %v1464 = vand.u32 %v962, 4294901760
        %v1465 = vsub.f32 %v962, %v1464
        %v1466 = vand.u32 %v1465, 4294901760
        %1467 = vmatpush1.msra.mxu0 %v1466
        %1468 = vmatprep.subr.mxu0 0.0
        %1469 = vmatpush1.msra.mxu0 0.0
        %1470 = vmatprep.subr.mxu0 0.0
        %1471 = vmatpush1.msra.mxu0 0.0
        %1472 = vmatprep.subr.mxu0 0.0
        %1473 = vmatpush1.msra.mxu0 0.0
        %1474 = vmatprep.subr.mxu0 0.0
        %1475 = vmatpush1.msra.mxu0 0.0
        %1476 = vmatprep.subr.mxu0 0.0
        %1477 = vmatpush1.msra.mxu0 0.0
        %1478 = vmatprep.subr.mxu0 0.0
        %1479 = vmatpush1.msra.mxu0 0.0
        %1480 = vmatprep.subr.mxu0 0.0
        %1481 = vmatpush1.msra.mxu0 0.0
        %1482 = vmatprep.subr.mxu0 0.0
        %1483 = vmatpush1.msra.mxu0 0.0
        %1484 = vmatprep.subr.mxu0 0.0
        %1485 = vmatpush1.msra.mxu0 0.0
        %1486 = vmatprep.subr.mxu0 0.0
        %1487 = vmatpush1.msra.mxu0 0.0
        %1488 = vmatprep.subr.mxu0 0.0
        %1489 = vmatpush1.msra.mxu0 0.0
        %1490 = vmatprep.subr.mxu0 0.0
        %1491 = vmatpush1.msra.mxu0 0.0
        %1492 = vmatprep.subr.mxu0 0.0
        %1493 = vmatpush1.msra.mxu0 0.0
        %1494 = vmatprep.subr.mxu0 0.0
        %1495 = vmatpush1.msra.mxu0 0.0
        %1496 = vmatprep.subr.mxu0 0.0
        %1497 = vmatpush1.msra.mxu0 0.0
        %1498 = vmatprep.subr.mxu0 0.0
        %1499 = vmatpush1.msra.mxu0 0.0
        %1500 = vmatprep.subr.mxu0 0.0
        %1501 = vmatpush1.msra.mxu0 0.0
        %1502 = vmatprep.subr.mxu0 0.0
        %1503 = vmatpush1.msra.mxu0 0.0
        %1504 = vmatprep.subr.mxu0 0.0
        %1505 = vmatpush1.msra.mxu0 0.0
        %1506 = vmatprep.subr.mxu0 0.0
        %1507 = vmatpush1.msra.mxu0 0.0
        %1508 = vmatprep.subr.mxu0 0.0
        %1509 = vmatpush1.msra.mxu0 0.0
        %1510 = vmatprep.subr.mxu0 0.0
        %1511 = vmatpush1.msra.mxu0 0.0
        %1512 = vmatprep.subr.mxu0 0.0
        %1513 = vmatpush1.msra.mxu0 0.0
        %1514 = vmatprep.subr.mxu0 0.0
        %1515 = vmatpush1.msra.mxu0 0.0
        %1516 = vmatprep.subr.mxu0 0.0
        %1517 = vmatpush1.msra.mxu0 0.0
        %1518 = vmatprep.subr.mxu0 0.0
        %1519 = vmatpush1.msra.mxu0 0.0
        %1520 = vmatprep.subr.mxu0 0.0
        %1521 = vmatpush1.msra.mxu0 0.0
        %1522 = vmatprep.subr.mxu0 0.0
        %1523 = vmatpush1.msra.mxu0 0.0
        %1524 = vmatprep.mubr.f32.mxu0 0.0
        %v1525 = vand.u32 %v247, 4294901760
        %1526 = vmatmul.mubr.f32.gmra.mrb[0].mxu0 %v1525
        %v1527 = vpop.f32.mrb[0].mxu0
        %v1528 = vadd.f32 %v1405, %v1527
        %v1529 = vpop.f32.mrb[0].mxu0
        %v1530 = vadd.f32 %v1407, %v1529
        %1531 = vmatprep.mubr.f32.mxu0 0.0
        %v1532 = vand.u32 %v250, 4294901760
        %1533 = vmatmul.mubr.f32.gmra.mrb[0].mxu0 %v1532
        %v1534 = vpop.f32.mrb[0].mxu0
        %v1535 = vadd.f32 %v1414, %v1534
        %v1536 = vpop.f32.mrb[0].mxu0
        %v1537 = vadd.f32 %v1416, %v1536
        %1538 = vmatprep.mubr.f32.mxu0 0.0
        %v1539 = vand.u32 %v253, 4294901760
        %1540 = vmatmul.mubr.f32.gmra.mrb[0].mxu0 %v1539
        %v1541 = vpop.f32.mrb[0].mxu0
        %v1542 = vadd.f32 %v1423, %v1541
        %v1543 = vpop.f32.mrb[0].mxu0
        %v1544 = vadd.f32 %v1425, %v1543
        %1545 = vmatprep.mubr.f32.mxu0 0.0
        %v1546 = vand.u32 %v256, 4294901760
        %1547 = vmatmul.mubr.f32.gmra.mrb[0].mxu0 %v1546
        %v1548 = vpop.f32.mrb[0].mxu0
        %v1549 = vadd.f32 %v1432, %v1548
        %v1550 = vpop.f32.mrb[0].mxu0
        %v1551 = vadd.f32 %v1434, %v1550
        %1552 = vdwg.mxu0
        %v1553 = vand.u32 %v957, 4294901760
        %1554 = vmatprep.subr.mxu0 %v1553
        %v1555 = vand.u32 %v956, 4294901760
        %1556 = vmatpush1.msra.mxu0 %v1555
        %v1557 = vand.u32 %v959, 4294901760
        %1558 = vmatprep.subr.mxu0 %v1557
        %v1559 = vand.u32 %v958, 4294901760
        %1560 = vmatpush1.msra.mxu0 %v1559
        %v1561 = vand.u32 %v961, 4294901760
        %1562 = vmatprep.subr.mxu0 %v1561
        %v1563 = vand.u32 %v960, 4294901760
        %1564 = vmatpush1.msra.mxu0 %v1563
        %v1565 = vand.u32 %v963, 4294901760
        %1566 = vmatprep.subr.mxu0 %v1565
        %v1567 = vand.u32 %v962, 4294901760
        %1568 = vmatpush1.msra.mxu0 %v1567
        %1569 = vmatprep.subr.mxu0 0.0
        %1570 = vmatpush1.msra.mxu0 0.0
        %1571 = vmatprep.subr.mxu0 0.0
        %1572 = vmatpush1.msra.mxu0 0.0
        %1573 = vmatprep.subr.mxu0 0.0
        %1574 = vmatpush1.msra.mxu0 0.0
        %1575 = vmatprep.subr.mxu0 0.0
        %1576 = vmatpush1.msra.mxu0 0.0
        %1577 = vmatprep.subr.mxu0 0.0
        %1578 = vmatpush1.msra.mxu0 0.0
        %1579 = vmatprep.subr.mxu0 0.0
        %1580 = vmatpush1.msra.mxu0 0.0
        %1581 = vmatprep.subr.mxu0 0.0
        %1582 = vmatpush1.msra.mxu0 0.0
        %1583 = vmatprep.subr.mxu0 0.0
        %1584 = vmatpush1.msra.mxu0 0.0
        %1585 = vmatprep.subr.mxu0 0.0
        %1586 = vmatpush1.msra.mxu0 0.0
        %1587 = vmatprep.subr.mxu0 0.0
        %1588 = vmatpush1.msra.mxu0 0.0
        %1589 = vmatprep.subr.mxu0 0.0
        %1590 = vmatpush1.msra.mxu0 0.0
        %1591 = vmatprep.subr.mxu0 0.0
        %1592 = vmatpush1.msra.mxu0 0.0
        %1593 = vmatprep.subr.mxu0 0.0
        %1594 = vmatpush1.msra.mxu0 0.0
        %1595 = vmatprep.subr.mxu0 0.0
        %1596 = vmatpush1.msra.mxu0 0.0
        %1597 = vmatprep.subr.mxu0 0.0
        %1598 = vmatpush1.msra.mxu0 0.0
        %1599 = vmatprep.subr.mxu0 0.0
        %1600 = vmatpush1.msra.mxu0 0.0
        %1601 = vmatprep.subr.mxu0 0.0
        %1602 = vmatpush1.msra.mxu0 0.0
        %1603 = vmatprep.subr.mxu0 0.0
        %1604 = vmatpush1.msra.mxu0 0.0
        %1605 = vmatprep.subr.mxu0 0.0
        %1606 = vmatpush1.msra.mxu0 0.0
        %1607 = vmatprep.subr.mxu0 0.0
        %1608 = vmatpush1.msra.mxu0 0.0
        %1609 = vmatprep.subr.mxu0 0.0
        %1610 = vmatpush1.msra.mxu0 0.0
        %1611 = vmatprep.subr.mxu0 0.0
        %1612 = vmatpush1.msra.mxu0 0.0
        %1613 = vmatprep.subr.mxu0 0.0
        %1614 = vmatpush1.msra.mxu0 0.0
        %1615 = vmatprep.subr.mxu0 0.0
        %1616 = vmatpush1.msra.mxu0 0.0
        %1617 = vmatprep.subr.mxu0 0.0
        %1618 = vmatpush1.msra.mxu0 0.0
        %1619 = vmatprep.subr.mxu0 0.0
        %1620 = vmatpush1.msra.mxu0 0.0
        %1621 = vmatprep.subr.mxu0 0.0
        %1622 = vmatpush1.msra.mxu0 0.0
        %1623 = vmatprep.subr.mxu0 0.0
        %1624 = vmatpush1.msra.mxu0 0.0
        %1625 = vmatprep.mubr.f32.mxu0 0.0
        %v1626 = vand.u32 %v247, 4294901760
        %1627 = vmatmul.mubr.f32.gmra.mrb[0].mxu0 %v1626
        %v1628 = vpop.f32.mrb[0].mxu0
        %v1629 = vadd.f32 %v1528, %v1628
        %v1630 = vpop.f32.mrb[0].mxu0
        %v1631 = vadd.f32 %v1530, %v1630
        %1632 = vmatprep.mubr.f32.mxu0 0.0
        %v1633 = vand.u32 %v250, 4294901760
        %1634 = vmatmul.mubr.f32.gmra.mrb[0].mxu0 %v1633
        %v1635 = vpop.f32.mrb[0].mxu0
        %v1636 = vadd.f32 %v1535, %v1635
        %v1637 = vpop.f32.mrb[0].mxu0
        %v1638 = vadd.f32 %v1537, %v1637
        %1639 = vmatprep.mubr.f32.mxu0 0.0
        %v1640 = vand.u32 %v253, 4294901760
        %1641 = vmatmul.mubr.f32.gmra.mrb[0].mxu0 %v1640
        %v1642 = vpop.f32.mrb[0].mxu0
        %v1643 = vadd.f32 %v1542, %v1642
        %v1644 = vpop.f32.mrb[0].mxu0
        %v1645 = vadd.f32 %v1544, %v1644
        %1646 = vmatprep.mubr.f32.mxu0 0.0
        %v1647 = vand.u32 %v256, 4294901760
        %1648 = vmatmul.mubr.f32.gmra.mrb[0].mxu0 %v1647
        %v1649 = vpop.f32.mrb[0].mxu0
        %v1650 = vadd.f32 %v1549, %v1649
        %v1651 = vpop.f32.mrb[0].mxu0
        %v1652 = vadd.f32 %v1551, %v1651
        %1653 = vdwg.mxu0
        %v1654 = vmax.f32 %v1629, 0.0
        %v1655 = vmax.f32 %v1631, 0.0
        %v1656 = vmax.f32 %v1636, 0.0
        %v1657 = vmax.f32 %v1638, 0.0
        %v1658 = vmax.f32 %v1643, 0.0
        %v1659 = vmax.f32 %v1645, 0.0
        %v1660 = vmax.f32 %v1650, 0.0
        %v1661 = vmax.f32 %v1652, 0.0
        %v1662 = vadd.f32 %v1654, %v956
        %v1663 = vadd.f32 %v1655, %v957
        %v1664 = vadd.f32 %v1656, %v958
        %v1665 = vadd.f32 %v1657, %v959
        %v1666 = vadd.f32 %v1658, %v960
        %v1667 = vadd.f32 %v1659, %v961
        %v1668 = vadd.f32 %v1660, %v962
        %v1669 = vadd.f32 %v1661, %v963
        %v1670 = vand.u32 %v1663, 4294901760
        %1671 = vmatprep.subr.mxu0 %v1670
        %v1672 = vand.u32 %v1662, 4294901760
        %1673 = vmatpush1.msra.mxu0 %v1672
        %v1674 = vand.u32 %v1665, 4294901760
        %1675 = vmatprep.subr.mxu0 %v1674
        %v1676 = vand.u32 %v1664, 4294901760
        %1677 = vmatpush1.msra.mxu0 %v1676
        %v1678 = vand.u32 %v1667, 4294901760
        %1679 = vmatprep.subr.mxu0 %v1678
        %v1680 = vand.u32 %v1666, 4294901760
        %1681 = vmatpush1.msra.mxu0 %v1680
        %v1682 = vand.u32 %v1669, 4294901760
        %1683 = vmatprep.subr.mxu0 %v1682
        %v1684 = vand.u32 %v1668, 4294901760
        %1685 = vmatpush1.msra.mxu0 %v1684
        %1686 = vmatprep.subr.mxu0 0.0
        %1687 = vmatpush1.msra.mxu0 0.0
        %1688 = vmatprep.subr.mxu0 0.0
        %1689 = vmatpush1.msra.mxu0 0.0
        %1690 = vmatprep.subr.mxu0 0.0
        %1691 = vmatpush1.msra.mxu0 0.0
        %1692 = vmatprep.subr.mxu0 0.0
        %1693 = vmatpush1.msra.mxu0 0.0
        %1694 = vmatprep.subr.mxu0 0.0
        %1695 = vmatpush1.msra.mxu0 0.0
        %1696 = vmatprep.subr.mxu0 0.0
        %1697 = vmatpush1.msra.mxu0 0.0
        %1698 = vmatprep.subr.mxu0 0.0
        %1699 = vmatpush1.msra.mxu0 0.0
        %1700 = vmatprep.subr.mxu0 0.0
        %1701 = vmatpush1.msra.mxu0 0.0
        %1702 = vmatprep.subr.mxu0 0.0
        %1703 = vmatpush1.msra.mxu0 0.0
        %1704 = vmatprep.subr.mxu0 0.0
        %1705 = vmatpush1.msra.mxu0 0.0
        %1706 = vmatprep.subr.mxu0 0.0
        %1707 = vmatpush1.msra.mxu0 0.0
        %1708 = vmatprep.subr.mxu0 0.0
        %1709 = vmatpush1.msra.mxu0 0.0
        %1710 = vmatprep.subr.mxu0 0.0
        %1711 = vmatpush1.msra.mxu0 0.0
        %1712 = vmatprep.subr.mxu0 0.0
        %1713 = vmatpush1.msra.mxu0 0.0
        %1714 = vmatprep.subr.mxu0 0.0
        %1715 = vmatpush1.msra.mxu0 0.0
        %1716 = vmatprep.subr.mxu0 0.0
        %1717 = vmatpush1.msra.mxu0 0.0
        %1718 = vmatprep.subr.mxu0 0.0
        %1719 = vmatpush1.msra.mxu0 0.0
        %1720 = vmatprep.subr.mxu0 0.0
        %1721 = vmatpush1.msra.mxu0 0.0
        %1722 = vmatprep.subr.mxu0 0.0
        %1723 = vmatpush1.msra.mxu0 0.0
        %1724 = vmatprep.subr.mxu0 0.0
        %1725 = vmatpush1.msra.mxu0 0.0
        %1726 = vmatprep.subr.mxu0 0.0
        %1727 = vmatpush1.msra.mxu0 0.0
        %1728 = vmatprep.subr.mxu0 0.0
        %1729 = vmatpush1.msra.mxu0 0.0
        %1730 = vmatprep.subr.mxu0 0.0
        %1731 = vmatpush1.msra.mxu0 0.0
        %1732 = vmatprep.subr.mxu0 0.0
        %1733 = vmatpush1.msra.mxu0 0.0
        %1734 = vmatprep.subr.mxu0 0.0
        %1735 = vmatpush1.msra.mxu0 0.0
        %1736 = vmatprep.subr.mxu0 0.0
        %1737 = vmatpush1.msra.mxu0 0.0
        %1738 = vmatprep.subr.mxu0 0.0
        %1739 = vmatpush1.msra.mxu0 0.0
        %1740 = vmatprep.subr.mxu0 0.0
        %1741 = vmatpush1.msra.mxu0 0.0
        %1742 = vmatprep.mubr.f32.mxu0 0.0
        %v1743 = vand.u32 %v247, 4294901760
        %v1744 = vsub.f32 %v247, %v1743
        %v1745 = vand.u32 %v1744, 4294901760
        %v1746 = vsub.f32 %v1744, %v1745
        %v1747 = vand.u32 %v1746, 4294901760
        %1748 = vmatmul.mubr.f32.gmra.mrb[0].mxu0 %v1747
        %v1749 = vpop.f32.mrb[0].mxu0
        %v1750 = vadd.f32 %v228, %v1749
        %v1751 = vpop.f32.mrb[0].mxu0
        %v1752 = vadd.f32 %v228, %v1751
        %1753 = vmatprep.mubr.f32.mxu0 0.0
        %v1754 = vand.u32 %v250, 4294901760
        %v1755 = vsub.f32 %v250, %v1754
        %v1756 = vand.u32 %v1755, 4294901760
        %v1757 = vsub.f32 %v1755, %v1756
        %v1758 = vand.u32 %v1757, 4294901760
        %1759 = vmatmul.mubr.f32.gmra.mrb[0].mxu0 %v1758
        %v1760 = vpop.f32.mrb[0].mxu0
        %v1761 = vadd.f32 %v233, %v1760
        %v1762 = vpop.f32.mrb[0].mxu0
        %v1763 = vadd.f32 %v233, %v1762
        %1764 = vmatprep.mubr.f32.mxu0 0.0
        %v1765 = vand.u32 %v253, 4294901760
        %v1766 = vsub.f32 %v253, %v1765
        %v1767 = vand.u32 %v1766, 4294901760
        %v1768 = vsub.f32 %v1766, %v1767
        %v1769 = vand.u32 %v1768, 4294901760
        %1770 = vmatmul.mubr.f32.gmra.mrb[0].mxu0 %v1769
        %v1771 = vpop.f32.mrb[0].mxu0
        %v1772 = vadd.f32 %v238, %v1771
        %v1773 = vpop.f32.mrb[0].mxu0
        %v1774 = vadd.f32 %v238, %v1773
        %1775 = vmatprep.mubr.f32.mxu0 0.0
        %v1776 = vand.u32 %v256, 4294901760
        %v1777 = vsub.f32 %v256, %v1776
        %v1778 = vand.u32 %v1777, 4294901760
        %v1779 = vsub.f32 %v1777, %v1778
        %v1780 = vand.u32 %v1779, 4294901760
        %1781 = vmatmul.mubr.f32.gmra.mrb[0].mxu0 %v1780
        %v1782 = vpop.f32.mrb[0].mxu0
        %v1783 = vadd.f32 %v243, %v1782
        %v1784 = vpop.f32.mrb[0].mxu0
        %v1785 = vadd.f32 %v243, %v1784
        %1786 = vdwg.mxu0
        %v1787 = vand.u32 %v1663, 4294901760
        %v1788 = vsub.f32 %v1663, %v1787
        %v1789 = vand.u32 %v1788, 4294901760
        %v1790 = vsub.f32 %v1788, %v1789
        %v1791 = vand.u32 %v1790, 4294901760
        %1792 = vmatprep.subr.mxu0 %v1791
        %v1793 = vand.u32 %v1662, 4294901760
        %v1794 = vsub.f32 %v1662, %v1793
        %v1795 = vand.u32 %v1794, 4294901760
        %v1796 = vsub.f32 %v1794, %v1795
        %v1797 = vand.u32 %v1796, 4294901760
        %1798 = vmatpush1.msra.mxu0 %v1797
        %v1799 = vand.u32 %v1665, 4294901760
        %v1800 = vsub.f32 %v1665, %v1799
        %v1801 = vand.u32 %v1800, 4294901760
        %v1802 = vsub.f32 %v1800, %v1801
        %v1803 = vand.u32 %v1802, 4294901760
        %1804 = vmatprep.subr.mxu0 %v1803
        %v1805 = vand.u32 %v1664, 4294901760
        %v1806 = vsub.f32 %v1664, %v1805
        %v1807 = vand.u32 %v1806, 4294901760
        %v1808 = vsub.f32 %v1806, %v1807
        %v1809 = vand.u32 %v1808, 4294901760
        %1810 = vmatpush1.msra.mxu0 %v1809
        %v1811 = vand.u32 %v1667, 4294901760
        %v1812 = vsub.f32 %v1667, %v1811
        %v1813 = vand.u32 %v1812, 4294901760
        %v1814 = vsub.f32 %v1812, %v1813
        %v1815 = vand.u32 %v1814, 4294901760
        %1816 = vmatprep.subr.mxu0 %v1815
        %v1817 = vand.u32 %v1666, 4294901760
        %v1818 = vsub.f32 %v1666, %v1817
        %v1819 = vand.u32 %v1818, 4294901760
        %v1820 = vsub.f32 %v1818, %v1819
        %v1821 = vand.u32 %v1820, 4294901760
        %1822 = vmatpush1.msra.mxu0 %v1821
        %v1823 = vand.u32 %v1669, 4294901760
        %v1824 = vsub.f32 %v1669, %v1823
        %v1825 = vand.u32 %v1824, 4294901760
        %v1826 = vsub.f32 %v1824, %v1825
        %v1827 = vand.u32 %v1826, 4294901760
        %1828 = vmatprep.subr.mxu0 %v1827
        %v1829 = vand.u32 %v1668, 4294901760
        %v1830 = vsub.f32 %v1668, %v1829
        %v1831 = vand.u32 %v1830, 4294901760
        %v1832 = vsub.f32 %v1830, %v1831
        %v1833 = vand.u32 %v1832, 4294901760
        %1834 = vmatpush1.msra.mxu0 %v1833
        %1835 = vmatprep.subr.mxu0 0.0
        %1836 = vmatpush1.msra.mxu0 0.0
        %1837 = vmatprep.subr.mxu0 0.0
        %1838 = vmatpush1.msra.mxu0 0.0
        %1839 = vmatprep.subr.mxu0 0.0
        %1840 = vmatpush1.msra.mxu0 0.0
        %1841 = vmatprep.subr.mxu0 0.0
        %1842 = vmatpush1.msra.mxu0 0.0
        %1843 = vmatprep.subr.mxu0 0.0
        %1844 = vmatpush1.msra.mxu0 0.0
        %1845 = vmatprep.subr.mxu0 0.0
        %1846 = vmatpush1.msra.mxu0 0.0
        %1847 = vmatprep.subr.mxu0 0.0
        %1848 = vmatpush1.msra.mxu0 0.0
        %1849 = vmatprep.subr.mxu0 0.0
        %1850 = vmatpush1.msra.mxu0 0.0
        %1851 = vmatprep.subr.mxu0 0.0
        %1852 = vmatpush1.msra.mxu0 0.0
        %1853 = vmatprep.subr.mxu0 0.0
        %1854 = vmatpush1.msra.mxu0 0.0
        %1855 = vmatprep.subr.mxu0 0.0
        %1856 = vmatpush1.msra.mxu0 0.0
        %1857 = vmatprep.subr.mxu0 0.0
        %1858 = vmatpush1.msra.mxu0 0.0
        %1859 = vmatprep.subr.mxu0 0.0
        %1860 = vmatpush1.msra.mxu0 0.0
        %1861 = vmatprep.subr.mxu0 0.0
        %1862 = vmatpush1.msra.mxu0 0.0
        %1863 = vmatprep.subr.mxu0 0.0
        %1864 = vmatpush1.msra.mxu0 0.0
        %1865 = vmatprep.subr.mxu0 0.0
        %1866 = vmatpush1.msra.mxu0 0.0
        %1867 = vmatprep.subr.mxu0 0.0
        %1868 = vmatpush1.msra.mxu0 0.0
        %1869 = vmatprep.subr.mxu0 0.0
        %1870 = vmatpush1.msra.mxu0 0.0
        %1871 = vmatprep.subr.mxu0 0.0
        %1872 = vmatpush1.msra.mxu0 0.0
        %1873 = vmatprep.subr.mxu0 0.0
        %1874 = vmatpush1.msra.mxu0 0.0
        %1875 = vmatprep.subr.mxu0 0.0
        %1876 = vmatpush1.msra.mxu0 0.0
        %1877 = vmatprep.subr.mxu0 0.0
        %1878 = vmatpush1.msra.mxu0 0.0
        %1879 = vmatprep.subr.mxu0 0.0
        %1880 = vmatpush1.msra.mxu0 0.0
        %1881 = vmatprep.subr.mxu0 0.0
        %1882 = vmatpush1.msra.mxu0 0.0
        %1883 = vmatprep.subr.mxu0 0.0
        %1884 = vmatpush1.msra.mxu0 0.0
        %1885 = vmatprep.subr.mxu0 0.0
        %1886 = vmatpush1.msra.mxu0 0.0
        %1887 = vmatprep.subr.mxu0 0.0
        %1888 = vmatpush1.msra.mxu0 0.0
        %1889 = vmatprep.subr.mxu0 0.0
        %1890 = vmatpush1.msra.mxu0 0.0
        %1891 = vmatprep.mubr.f32.mxu0 0.0
        %v1892 = vand.u32 %v247, 4294901760
        %1893 = vmatmul.mubr.f32.gmra.mrb[0].mxu0 %v1892
        %v1894 = vpop.f32.mrb[0].mxu0
        %v1895 = vadd.f32 %v1750, %v1894
        %v1896 = vpop.f32.mrb[0].mxu0
        %v1897 = vadd.f32 %v1752, %v1896
        %1898 = vmatprep.mubr.f32.mxu0 0.0
        %v1899 = vand.u32 %v250, 4294901760
        %1900 = vmatmul.mubr.f32.gmra.mrb[0].mxu0 %v1899
        %v1901 = vpop.f32.mrb[0].mxu0
        %v1902 = vadd.f32 %v1761, %v1901
        %v1903 = vpop.f32.mrb[0].mxu0
        %v1904 = vadd.f32 %v1763, %v1903
        %1905 = vmatprep.mubr.f32.mxu0 0.0
        %v1906 = vand.u32 %v253, 4294901760
        %1907 = vmatmul.mubr.f32.gmra.mrb[0].mxu0 %v1906
        %v1908 = vpop.f32.mrb[0].mxu0
        %v1909 = vadd.f32 %v1772, %v1908
        %v1910 = vpop.f32.mrb[0].mxu0
        %v1911 = vadd.f32 %v1774, %v1910
        %1912 = vmatprep.mubr.f32.mxu0 0.0
        %v1913 = vand.u32 %v256, 4294901760
        %1914 = vmatmul.mubr.f32.gmra.mrb[0].mxu0 %v1913
        %v1915 = vpop.f32.mrb[0].mxu0
        %v1916 = vadd.f32 %v1783, %v1915
        %v1917 = vpop.f32.mrb[0].mxu0
        %v1918 = vadd.f32 %v1785, %v1917
        %1919 = vdwg.mxu0
        %v1920 = vand.u32 %v1663, 4294901760
        %v1921 = vsub.f32 %v1663, %v1920
        %1922 = vmatprep.subr.mxu0 %v1921
        %v1923 = vand.u32 %v1662, 4294901760
        %v1924 = vsub.f32 %v1662, %v1923
        %1925 = vmatpush1.msra.mxu0 %v1924
        %v1926 = vand.u32 %v1665, 4294901760
        %v1927 = vsub.f32 %v1665, %v1926
        %1928 = vmatprep.subr.mxu0 %v1927
        %v1929 = vand.u32 %v1664, 4294901760
        %v1930 = vsub.f32 %v1664, %v1929
        %1931 = vmatpush1.msra.mxu0 %v1930
        %v1932 = vand.u32 %v1667, 4294901760
        %v1933 = vsub.f32 %v1667, %v1932
        %1934 = vmatprep.subr.mxu0 %v1933
        %v1935 = vand.u32 %v1666, 4294901760
        %v1936 = vsub.f32 %v1666, %v1935
        %1937 = vmatpush1.msra.mxu0 %v1936
        %v1938 = vand.u32 %v1669, 4294901760
        %v1939 = vsub.f32 %v1669, %v1938
        %1940 = vmatprep.subr.mxu0 %v1939
        %v1941 = vand.u32 %v1668, 4294901760
        %v1942 = vsub.f32 %v1668, %v1941
        %1943 = vmatpush1.msra.mxu0 %v1942
        %1944 = vmatprep.subr.mxu0 0.0
        %1945 = vmatpush1.msra.mxu0 0.0
        %1946 = vmatprep.subr.mxu0 0.0
        %1947 = vmatpush1.msra.mxu0 0.0
        %1948 = vmatprep.subr.mxu0 0.0
        %1949 = vmatpush1.msra.mxu0 0.0
        %1950 = vmatprep.subr.mxu0 0.0
        %1951 = vmatpush1.msra.mxu0 0.0
        %1952 = vmatprep.subr.mxu0 0.0
        %1953 = vmatpush1.msra.mxu0 0.0
        %1954 = vmatprep.subr.mxu0 0.0
        %1955 = vmatpush1.msra.mxu0 0.0
        %1956 = vmatprep.subr.mxu0 0.0
        %1957 = vmatpush1.msra.mxu0 0.0
        %1958 = vmatprep.subr.mxu0 0.0
        %1959 = vmatpush1.msra.mxu0 0.0
        %1960 = vmatprep.subr.mxu0 0.0
        %1961 = vmatpush1.msra.mxu0 0.0
        %1962 = vmatprep.subr.mxu0 0.0
        %1963 = vmatpush1.msra.mxu0 0.0
        %1964 = vmatprep.subr.mxu0 0.0
        %1965 = vmatpush1.msra.mxu0 0.0
        %1966 = vmatprep.subr.mxu0 0.0
        %1967 = vmatpush1.msra.mxu0 0.0
        %1968 = vmatprep.subr.mxu0 0.0
        %1969 = vmatpush1.msra.mxu0 0.0
        %1970 = vmatprep.subr.mxu0 0.0
        %1971 = vmatpush1.msra.mxu0 0.0
        %1972 = vmatprep.subr.mxu0 0.0
        %1973 = vmatpush1.msra.mxu0 0.0
        %1974 = vmatprep.subr.mxu0 0.0
        %1975 = vmatpush1.msra.mxu0 0.0
        %1976 = vmatprep.subr.mxu0 0.0
        %1977 = vmatpush1.msra.mxu0 0.0
        %1978 = vmatprep.subr.mxu0 0.0
        %1979 = vmatpush1.msra.mxu0 0.0
        %1980 = vmatprep.subr.mxu0 0.0
        %1981 = vmatpush1.msra.mxu0 0.0
        %1982 = vmatprep.subr.mxu0 0.0
        %1983 = vmatpush1.msra.mxu0 0.0
        %1984 = vmatprep.subr.mxu0 0.0
        %1985 = vmatpush1.msra.mxu0 0.0
        %1986 = vmatprep.subr.mxu0 0.0
        %1987 = vmatpush1.msra.mxu0 0.0
        %1988 = vmatprep.subr.mxu0 0.0
        %1989 = vmatpush1.msra.mxu0 0.0
        %1990 = vmatprep.subr.mxu0 0.0
        %1991 = vmatpush1.msra.mxu0 0.0
        %1992 = vmatprep.subr.mxu0 0.0
        %1993 = vmatpush1.msra.mxu0 0.0
        %1994 = vmatprep.subr.mxu0 0.0
        %1995 = vmatpush1.msra.mxu0 0.0
        %1996 = vmatprep.subr.mxu0 0.0
        %1997 = vmatpush1.msra.mxu0 0.0
        %1998 = vmatprep.subr.mxu0 0.0
        %1999 = vmatpush1.msra.mxu0 0.0
        %2000 = vmatprep.mubr.f32.mxu0 0.0
        %v2001 = vand.u32 %v247, 4294901760
        %v2002 = vsub.f32 %v247, %v2001
        %2003 = vmatmul.mubr.f32.gmra.mrb[0].mxu0 %v2002
        %v2004 = vpop.f32.mrb[0].mxu0
        %v2005 = vadd.f32 %v1895, %v2004
        %v2006 = vpop.f32.mrb[0].mxu0
        %v2007 = vadd.f32 %v1897, %v2006
        %2008 = vmatprep.mubr.f32.mxu0 0.0
        %v2009 = vand.u32 %v250, 4294901760
        %v2010 = vsub.f32 %v250, %v2009
        %2011 = vmatmul.mubr.f32.gmra.mrb[0].mxu0 %v2010
        %v2012 = vpop.f32.mrb[0].mxu0
        %v2013 = vadd.f32 %v1902, %v2012
        %v2014 = vpop.f32.mrb[0].mxu0
        %v2015 = vadd.f32 %v1904, %v2014
        %2016 = vmatprep.mubr.f32.mxu0 0.0
        %v2017 = vand.u32 %v253, 4294901760
        %v2018 = vsub.f32 %v253, %v2017
        %2019 = vmatmul.mubr.f32.gmra.mrb[0].mxu0 %v2018
        %v2020 = vpop.f32.mrb[0].mxu0
        %v2021 = vadd.f32 %v1909, %v2020
        %v2022 = vpop.f32.mrb[0].mxu0
        %v2023 = vadd.f32 %v1911, %v2022
        %2024 = vmatprep.mubr.f32.mxu0 0.0
        %v2025 = vand.u32 %v256, 4294901760
        %v2026 = vsub.f32 %v256, %v2025
        %2027 = vmatmul.mubr.f32.gmra.mrb[0].mxu0 %v2026
        %v2028 = vpop.f32.mrb[0].mxu0
        %v2029 = vadd.f32 %v1916, %v2028
        %v2030 = vpop.f32.mrb[0].mxu0
        %v2031 = vadd.f32 %v1918, %v2030
        %2032 = vdwg.mxu0
        %v2033 = vand.u32 %v1663, 4294901760
        %2034 = vmatprep.subr.mxu0 %v2033
        %v2035 = vand.u32 %v1662, 4294901760
        %2036 = vmatpush1.msra.mxu0 %v2035
        %v2037 = vand.u32 %v1665, 4294901760
        %2038 = vmatprep.subr.mxu0 %v2037
        %v2039 = vand.u32 %v1664, 4294901760
        %2040 = vmatpush1.msra.mxu0 %v2039
        %v2041 = vand.u32 %v1667, 4294901760
        %2042 = vmatprep.subr.mxu0 %v2041
        %v2043 = vand.u32 %v1666, 4294901760
        %2044 = vmatpush1.msra.mxu0 %v2043
        %v2045 = vand.u32 %v1669, 4294901760
        %2046 = vmatprep.subr.mxu0 %v2045
        %v2047 = vand.u32 %v1668, 4294901760
        %2048 = vmatpush1.msra.mxu0 %v2047
        %2049 = vmatprep.subr.mxu0 0.0
        %2050 = vmatpush1.msra.mxu0 0.0
        %2051 = vmatprep.subr.mxu0 0.0
        %2052 = vmatpush1.msra.mxu0 0.0
        %2053 = vmatprep.subr.mxu0 0.0
        %2054 = vmatpush1.msra.mxu0 0.0
        %2055 = vmatprep.subr.mxu0 0.0
        %2056 = vmatpush1.msra.mxu0 0.0
        %2057 = vmatprep.subr.mxu0 0.0
        %2058 = vmatpush1.msra.mxu0 0.0
        %2059 = vmatprep.subr.mxu0 0.0
        %2060 = vmatpush1.msra.mxu0 0.0
        %2061 = vmatprep.subr.mxu0 0.0
        %2062 = vmatpush1.msra.mxu0 0.0
        %2063 = vmatprep.subr.mxu0 0.0
        %2064 = vmatpush1.msra.mxu0 0.0
        %2065 = vmatprep.subr.mxu0 0.0
        %2066 = vmatpush1.msra.mxu0 0.0
        %2067 = vmatprep.subr.mxu0 0.0
        %2068 = vmatpush1.msra.mxu0 0.0
        %2069 = vmatprep.subr.mxu0 0.0
        %2070 = vmatpush1.msra.mxu0 0.0
        %2071 = vmatprep.subr.mxu0 0.0
        %2072 = vmatpush1.msra.mxu0 0.0
        %2073 = vmatprep.subr.mxu0 0.0
        %2074 = vmatpush1.msra.mxu0 0.0
        %2075 = vmatprep.subr.mxu0 0.0
        %2076 = vmatpush1.msra.mxu0 0.0
        %2077 = vmatprep.subr.mxu0 0.0
        %2078 = vmatpush1.msra.mxu0 0.0
        %2079 = vmatprep.subr.mxu0 0.0
        %2080 = vmatpush1.msra.mxu0 0.0
        %2081 = vmatprep.subr.mxu0 0.0
        %2082 = vmatpush1.msra.mxu0 0.0
        %2083 = vmatprep.subr.mxu0 0.0
        %2084 = vmatpush1.msra.mxu0 0.0
        %2085 = vmatprep.subr.mxu0 0.0
        %2086 = vmatpush1.msra.mxu0 0.0
        %2087 = vmatprep.subr.mxu0 0.0
        %2088 = vmatpush1.msra.mxu0 0.0
        %2089 = vmatprep.subr.mxu0 0.0
        %2090 = vmatpush1.msra.mxu0 0.0
        %2091 = vmatprep.subr.mxu0 0.0
        %2092 = vmatpush1.msra.mxu0 0.0
        %2093 = vmatprep.subr.mxu0 0.0
        %2094 = vmatpush1.msra.mxu0 0.0
        %2095 = vmatprep.subr.mxu0 0.0
        %2096 = vmatpush1.msra.mxu0 0.0
        %2097 = vmatprep.subr.mxu0 0.0
        %2098 = vmatpush1.msra.mxu0 0.0
        %2099 = vmatprep.subr.mxu0 0.0
        %2100 = vmatpush1.msra.mxu0 0.0
        %2101 = vmatprep.subr.mxu0 0.0
        %2102 = vmatpush1.msra.mxu0 0.0
        %2103 = vmatprep.subr.mxu0 0.0
        %2104 = vmatpush1.msra.mxu0 0.0
        %2105 = vmatprep.mubr.f32.mxu0 0.0
        %v2106 = vand.u32 %v247, 4294901760
        %v2107 = vsub.f32 %v247, %v2106
        %v2108 = vand.u32 %v2107, 4294901760
        %2109 = vmatmul.mubr.f32.gmra.mrb[0].mxu0 %v2108
        %v2110 = vpop.f32.mrb[0].mxu0
        %v2111 = vadd.f32 %v2005, %v2110
        %v2112 = vpop.f32.mrb[0].mxu0
        %v2113 = vadd.f32 %v2007, %v2112
        %2114 = vmatprep.mubr.f32.mxu0 0.0
        %v2115 = vand.u32 %v250, 4294901760
        %v2116 = vsub.f32 %v250, %v2115
        %v2117 = vand.u32 %v2116, 4294901760
        %2118 = vmatmul.mubr.f32.gmra.mrb[0].mxu0 %v2117
        %v2119 = vpop.f32.mrb[0].mxu0
        %v2120 = vadd.f32 %v2013, %v2119
        %v2121 = vpop.f32.mrb[0].mxu0
        %v2122 = vadd.f32 %v2015, %v2121
        %2123 = vmatprep.mubr.f32.mxu0 0.0
        %v2124 = vand.u32 %v253, 4294901760
        %v2125 = vsub.f32 %v253, %v2124
        %v2126 = vand.u32 %v2125, 4294901760
        %2127 = vmatmul.mubr.f32.gmra.mrb[0].mxu0 %v2126
        %v2128 = vpop.f32.mrb[0].mxu0
        %v2129 = vadd.f32 %v2021, %v2128
        %v2130 = vpop.f32.mrb[0].mxu0
        %v2131 = vadd.f32 %v2023, %v2130
        %2132 = vmatprep.mubr.f32.mxu0 0.0
        %v2133 = vand.u32 %v256, 4294901760
        %v2134 = vsub.f32 %v256, %v2133
        %v2135 = vand.u32 %v2134, 4294901760
        %2136 = vmatmul.mubr.f32.gmra.mrb[0].mxu0 %v2135
        %v2137 = vpop.f32.mrb[0].mxu0
        %v2138 = vadd.f32 %v2029, %v2137
        %v2139 = vpop.f32.mrb[0].mxu0
        %v2140 = vadd.f32 %v2031, %v2139
        %2141 = vdwg.mxu0
        %v2142 = vand.u32 %v1663, 4294901760
        %v2143 = vsub.f32 %v1663, %v2142
        %v2144 = vand.u32 %v2143, 4294901760
        %2145 = vmatprep.subr.mxu0 %v2144
        %v2146 = vand.u32 %v1662, 4294901760
        %v2147 = vsub.f32 %v1662, %v2146
        %v2148 = vand.u32 %v2147, 4294901760
        %2149 = vmatpush1.msra.mxu0 %v2148
        %v2150 = vand.u32 %v1665, 4294901760
        %v2151 = vsub.f32 %v1665, %v2150
        %v2152 = vand.u32 %v2151, 4294901760
        %2153 = vmatprep.subr.mxu0 %v2152
        %v2154 = vand.u32 %v1664, 4294901760
        %v2155 = vsub.f32 %v1664, %v2154
        %v2156 = vand.u32 %v2155, 4294901760
        %2157 = vmatpush1.msra.mxu0 %v2156
        %v2158 = vand.u32 %v1667, 4294901760
        %v2159 = vsub.f32 %v1667, %v2158
        %v2160 = vand.u32 %v2159, 4294901760
        %2161 = vmatprep.subr.mxu0 %v2160
        %v2162 = vand.u32 %v1666, 4294901760
        %v2163 = vsub.f32 %v1666, %v2162
        %v2164 = vand.u32 %v2163, 4294901760
        %2165 = vmatpush1.msra.mxu0 %v2164
        %v2166 = vand.u32 %v1669, 4294901760
        %v2167 = vsub.f32 %v1669, %v2166
        %v2168 = vand.u32 %v2167, 4294901760
        %2169 = vmatprep.subr.mxu0 %v2168
        %v2170 = vand.u32 %v1668, 4294901760
        %v2171 = vsub.f32 %v1668, %v2170
        %v2172 = vand.u32 %v2171, 4294901760
        %2173 = vmatpush1.msra.mxu0 %v2172
        %2174 = vmatprep.subr.mxu0 0.0
        %2175 = vmatpush1.msra.mxu0 0.0
        %2176 = vmatprep.subr.mxu0 0.0
        %2177 = vmatpush1.msra.mxu0 0.0
        %2178 = vmatprep.subr.mxu0 0.0
        %2179 = vmatpush1.msra.mxu0 0.0
        %2180 = vmatprep.subr.mxu0 0.0
        %2181 = vmatpush1.msra.mxu0 0.0
        %2182 = vmatprep.subr.mxu0 0.0
        %2183 = vmatpush1.msra.mxu0 0.0
        %2184 = vmatprep.subr.mxu0 0.0
        %2185 = vmatpush1.msra.mxu0 0.0
        %2186 = vmatprep.subr.mxu0 0.0
        %2187 = vmatpush1.msra.mxu0 0.0
        %2188 = vmatprep.subr.mxu0 0.0
        %2189 = vmatpush1.msra.mxu0 0.0
        %2190 = vmatprep.subr.mxu0 0.0
        %2191 = vmatpush1.msra.mxu0 0.0
        %2192 = vmatprep.subr.mxu0 0.0
        %2193 = vmatpush1.msra.mxu0 0.0
        %2194 = vmatprep.subr.mxu0 0.0
        %2195 = vmatpush1.msra.mxu0 0.0
        %2196 = vmatprep.subr.mxu0 0.0
        %2197 = vmatpush1.msra.mxu0 0.0
        %2198 = vmatprep.subr.mxu0 0.0
        %2199 = vmatpush1.msra.mxu0 0.0
        %2200 = vmatprep.subr.mxu0 0.0
        %2201 = vmatpush1.msra.mxu0 0.0
        %2202 = vmatprep.subr.mxu0 0.0
        %2203 = vmatpush1.msra.mxu0 0.0
        %2204 = vmatprep.subr.mxu0 0.0
        %2205 = vmatpush1.msra.mxu0 0.0
        %2206 = vmatprep.subr.mxu0 0.0
        %2207 = vmatpush1.msra.mxu0 0.0
        %2208 = vmatprep.subr.mxu0 0.0
        %2209 = vmatpush1.msra.mxu0 0.0
        %2210 = vmatprep.subr.mxu0 0.0
        %2211 = vmatpush1.msra.mxu0 0.0
        %2212 = vmatprep.subr.mxu0 0.0
        %2213 = vmatpush1.msra.mxu0 0.0
        %2214 = vmatprep.subr.mxu0 0.0
        %2215 = vmatpush1.msra.mxu0 0.0
        %2216 = vmatprep.subr.mxu0 0.0
        %2217 = vmatpush1.msra.mxu0 0.0
        %2218 = vmatprep.subr.mxu0 0.0
        %2219 = vmatpush1.msra.mxu0 0.0
        %2220 = vmatprep.subr.mxu0 0.0
        %2221 = vmatpush1.msra.mxu0 0.0
        %2222 = vmatprep.subr.mxu0 0.0
        %2223 = vmatpush1.msra.mxu0 0.0
        %2224 = vmatprep.subr.mxu0 0.0
        %2225 = vmatpush1.msra.mxu0 0.0
        %2226 = vmatprep.subr.mxu0 0.0
        %2227 = vmatpush1.msra.mxu0 0.0
        %2228 = vmatprep.subr.mxu0 0.0
        %2229 = vmatpush1.msra.mxu0 0.0
        %2230 = vmatprep.mubr.f32.mxu0 0.0
        %v2231 = vand.u32 %v247, 4294901760
        %2232 = vmatmul.mubr.f32.gmra.mrb[0].mxu0 %v2231
        %v2233 = vpop.f32.mrb[0].mxu0
        %v2234 = vadd.f32 %v2111, %v2233
        %v2235 = vpop.f32.mrb[0].mxu0
        %v2236 = vadd.f32 %v2113, %v2235
        %2237 = vmatprep.mubr.f32.mxu0 0.0
        %v2238 = vand.u32 %v250, 4294901760
        %2239 = vmatmul.mubr.f32.gmra.mrb[0].mxu0 %v2238
        %v2240 = vpop.f32.mrb[0].mxu0
        %v2241 = vadd.f32 %v2120, %v2240
        %v2242 = vpop.f32.mrb[0].mxu0
        %v2243 = vadd.f32 %v2122, %v2242
        %2244 = vmatprep.mubr.f32.mxu0 0.0
        %v2245 = vand.u32 %v253, 4294901760
        %2246 = vmatmul.mubr.f32.gmra.mrb[0].mxu0 %v2245
        %v2247 = vpop.f32.mrb[0].mxu0
        %v2248 = vadd.f32 %v2129, %v2247
        %v2249 = vpop.f32.mrb[0].mxu0
        %v2250 = vadd.f32 %v2131, %v2249
        %2251 = vmatprep.mubr.f32.mxu0 0.0
        %v2252 = vand.u32 %v256, 4294901760
        %2253 = vmatmul.mubr.f32.gmra.mrb[0].mxu0 %v2252
        %v2254 = vpop.f32.mrb[0].mxu0
        %v2255 = vadd.f32 %v2138, %v2254
        %v2256 = vpop.f32.mrb[0].mxu0
        %v2257 = vadd.f32 %v2140, %v2256
        %2258 = vdwg.mxu0
        %v2259 = vand.u32 %v1663, 4294901760
        %2260 = vmatprep.subr.mxu0 %v2259
        %v2261 = vand.u32 %v1662, 4294901760
        %2262 = vmatpush1.msra.mxu0 %v2261
        %v2263 = vand.u32 %v1665, 4294901760
        %2264 = vmatprep.subr.mxu0 %v2263
        %v2265 = vand.u32 %v1664, 4294901760
        %2266 = vmatpush1.msra.mxu0 %v2265
        %v2267 = vand.u32 %v1667, 4294901760
        %2268 = vmatprep.subr.mxu0 %v2267
        %v2269 = vand.u32 %v1666, 4294901760
        %2270 = vmatpush1.msra.mxu0 %v2269
        %v2271 = vand.u32 %v1669, 4294901760
        %2272 = vmatprep.subr.mxu0 %v2271
        %v2273 = vand.u32 %v1668, 4294901760
        %2274 = vmatpush1.msra.mxu0 %v2273
        %2275 = vmatprep.subr.mxu0 0.0
        %2276 = vmatpush1.msra.mxu0 0.0
        %2277 = vmatprep.subr.mxu0 0.0
        %2278 = vmatpush1.msra.mxu0 0.0
        %2279 = vmatprep.subr.mxu0 0.0
        %2280 = vmatpush1.msra.mxu0 0.0
        %2281 = vmatprep.subr.mxu0 0.0
        %2282 = vmatpush1.msra.mxu0 0.0
        %2283 = vmatprep.subr.mxu0 0.0
        %2284 = vmatpush1.msra.mxu0 0.0
        %2285 = vmatprep.subr.mxu0 0.0
        %2286 = vmatpush1.msra.mxu0 0.0
        %2287 = vmatprep.subr.mxu0 0.0
        %2288 = vmatpush1.msra.mxu0 0.0
        %2289 = vmatprep.subr.mxu0 0.0
        %2290 = vmatpush1.msra.mxu0 0.0
        %2291 = vmatprep.subr.mxu0 0.0
        %2292 = vmatpush1.msra.mxu0 0.0
        %2293 = vmatprep.subr.mxu0 0.0
        %2294 = vmatpush1.msra.mxu0 0.0
        %2295 = vmatprep.subr.mxu0 0.0
        %2296 = vmatpush1.msra.mxu0 0.0
        %2297 = vmatprep.subr.mxu0 0.0
        %2298 = vmatpush1.msra.mxu0 0.0
        %2299 = vmatprep.subr.mxu0 0.0
        %2300 = vmatpush1.msra.mxu0 0.0
        %2301 = vmatprep.subr.mxu0 0.0
        %2302 = vmatpush1.msra.mxu0 0.0
        %2303 = vmatprep.subr.mxu0 0.0
        %2304 = vmatpush1.msra.mxu0 0.0
        %2305 = vmatprep.subr.mxu0 0.0
        %2306 = vmatpush1.msra.mxu0 0.0
        %2307 = vmatprep.subr.mxu0 0.0
        %2308 = vmatpush1.msra.mxu0 0.0
        %2309 = vmatprep.subr.mxu0 0.0
        %2310 = vmatpush1.msra.mxu0 0.0
        %2311 = vmatprep.subr.mxu0 0.0
        %2312 = vmatpush1.msra.mxu0 0.0
        %2313 = vmatprep.subr.mxu0 0.0
        %2314 = vmatpush1.msra.mxu0 0.0
        %2315 = vmatprep.subr.mxu0 0.0
        %2316 = vmatpush1.msra.mxu0 0.0
        %2317 = vmatprep.subr.mxu0 0.0
        %2318 = vmatpush1.msra.mxu0 0.0
        %2319 = vmatprep.subr.mxu0 0.0
        %2320 = vmatpush1.msra.mxu0 0.0
        %2321 = vmatprep.subr.mxu0 0.0
        %2322 = vmatpush1.msra.mxu0 0.0
        %2323 = vmatprep.subr.mxu0 0.0
        %2324 = vmatpush1.msra.mxu0 0.0
        %2325 = vmatprep.subr.mxu0 0.0
        %2326 = vmatpush1.msra.mxu0 0.0
        %2327 = vmatprep.subr.mxu0 0.0
        %2328 = vmatpush1.msra.mxu0 0.0
        %2329 = vmatprep.subr.mxu0 0.0
        %2330 = vmatpush1.msra.mxu0 0.0
        %2331 = vmatprep.mubr.f32.mxu0 0.0
        %v2332 = vand.u32 %v247, 4294901760
        %2333 = vmatmul.mubr.f32.gmra.mrb[0].mxu0 %v2332
        %v2334 = vpop.f32.mrb[0].mxu0
        %v2335 = vadd.f32 %v2234, %v2334
        %v2336 = vpop.f32.mrb[0].mxu0
        %v2337 = vadd.f32 %v2236, %v2336
        %2338 = vmatprep.mubr.f32.mxu0 0.0
        %v2339 = vand.u32 %v250, 4294901760
        %2340 = vmatmul.mubr.f32.gmra.mrb[0].mxu0 %v2339
        %v2341 = vpop.f32.mrb[0].mxu0
        %v2342 = vadd.f32 %v2241, %v2341
        %v2343 = vpop.f32.mrb[0].mxu0
        %v2344 = vadd.f32 %v2243, %v2343
        %2345 = vmatprep.mubr.f32.mxu0 0.0
        %v2346 = vand.u32 %v253, 4294901760
        %2347 = vmatmul.mubr.f32.gmra.mrb[0].mxu0 %v2346
        %v2348 = vpop.f32.mrb[0].mxu0
        %v2349 = vadd.f32 %v2248, %v2348
        %v2350 = vpop.f32.mrb[0].mxu0
        %v2351 = vadd.f32 %v2250, %v2350
        %2352 = vmatprep.mubr.f32.mxu0 0.0
        %v2353 = vand.u32 %v256, 4294901760
        %2354 = vmatmul.mubr.f32.gmra.mrb[0].mxu0 %v2353
        %v2355 = vpop.f32.mrb[0].mxu0
        %v2356 = vadd.f32 %v2255, %v2355
        %v2357 = vpop.f32.mrb[0].mxu0
        %v2358 = vadd.f32 %v2257, %v2357
        %2359 = vdwg.mxu0
        %v2360 = vmax.f32 %v2335, 0.0
        %v2361 = vmax.f32 %v2337, 0.0
        %v2362 = vmax.f32 %v2342, 0.0
        %v2363 = vmax.f32 %v2344, 0.0
        %v2364 = vmax.f32 %v2349, 0.0
        %v2365 = vmax.f32 %v2351, 0.0
        %v2366 = vmax.f32 %v2356, 0.0
        %v2367 = vmax.f32 %v2358, 0.0
        %v2368 = vadd.f32 %v2360, %v1662
        %v2369 = vadd.f32 %v2361, %v1663
        %v2370 = vadd.f32 %v2362, %v1664
        %v2371 = vadd.f32 %v2363, %v1665
        %v2372 = vadd.f32 %v2364, %v1666
        %v2373 = vadd.f32 %v2365, %v1667
        %v2374 = vadd.f32 %v2366, %v1668
        %v2375 = vadd.f32 %v2367, %v1669
        %2376 = vst [vmem:[%s206] sm:$0xff] %v2368
        %2377 = vst [vmem:[%s206 + $0x8] sm:$0xff] %v2369
        %2378 = vst [vmem:[%s206 + $0x10] sm:$0xff] %v2370
        %2379 = vst [vmem:[%s206 + $0x18] sm:$0xff] %v2371
        %2380 = vst [vmem:[%s206 + $0x20] sm:$0xff] %v2372
        %2381 = vst [vmem:[%s206 + $0x28] sm:$0xff] %v2373
        %2382 = vst [vmem:[%s206 + $0x30] sm:$0xff] %v2374
        %2383 = vst [vmem:[%s206 + $0x38] sm:$0xff] %v2375
        %s2384 = sand.u32 %s112, 1
        %s2385 = scalar_lea.sflag [#allocation4], %s2384
        %s2386 = sand.u32 %s112, 1
        %s2387 = smul.addr %s2386, 64
        %s2388 = scalar_lea.vmem [#allocation5], %s2387
        // Predicated region
        $region37: #{tpu_custom_call.1} parent=31 // pred_check
          %p2389 = pneg %p122
        $region38: #{tpu_custom_call.1} parent=31 // pred_check_branch
          %2391 = sbr.rel (%p2389) target = $region40
        $region39: #{tpu_custom_call.1} parent=31 // pred_region
          %s2392 = smul.u32 2, %s25
          %s2394 = ssub.s32 1024, 1024
          %2395 = vsyncadd %s2385, %s2394
          %s2396 = smul.addr %s24, 8
          %s2397 = sadd.s32 %s2392, %s2396
          %s2398 = smul.addr %s2397, 128
          %s2399 = scalar_lea.hbm %s3, %s2398
          %s2400 = sshll.u32 %s2388, 4
          %s2401 = int_to_ptr.vmem [resolvable:$true] %s2400
          %2406 = dma.vmem_to_hbm [thread:$0]  %s2401, 1024, %s2399, %s2385, 256, 256, 16
        $region40: #{tpu_custom_call.1} parent=31 // pred_fallthru
          _
      $region32: #{tpu_custom_call.1} parent=5 // pred_fallthru
        _
      %p2407 = scmp.le.s32.totalorder 2, %s15
      // Predicated region
      $region41: #{tpu_custom_call.1} parent=5 // pred_check
        %p2408 = pneg %p2407
      $region42: #{tpu_custom_call.1} parent=5 // pred_check_branch
        %2410 = sbr.rel (%p2408) target = $region44
      $region43: #{tpu_custom_call.1} parent=5 // pred_region
        %s2411 = ssub.s32 %s15, 2
        // Predicated region
        $region45: #{tpu_custom_call.1} parent=43 // pred_check
          %p2412 = pneg %p128
        $region46: #{tpu_custom_call.1} parent=43 // pred_check_branch
          %2414 = sbr.rel (%p2412) target = $region48
        $region47: #{tpu_custom_call.1} parent=43 // pred_region
          %s2415 = sand.u32 %s113, 1
          %s2416 = scalar_lea.sflag [#allocation4], %s2415
          %s2417 = sand.u32 %s113, 1
          %s2418 = smul.addr %s2417, 64
          %s2419 = scalar_lea.vmem [#allocation5], %s2418
          %2420 = dma.done %s2416, 1024
        $region48: #{tpu_custom_call.1} parent=43 // pred_fallthru
          _
      $region44: #{tpu_custom_call.1} parent=5 // pred_fallthru
        _
    $region6: #{tpu_custom_call.1} parent=1 // loop_footer
      %s19 = sadd.s32 1, %s15
    $region7: #{tpu_custom_call.1} parent=1 // loop_footer_branch
      %14 = sbr.rel target = $region3
    $region8: #{tpu_custom_call.1} parent=1 // loop_exit
      _
    %2421 = vsyncpa [#allocation3], 1
    %s2422 = scalar_lea.sflag [#allocation3], 1
    %2423 = vsyncpa %s2422, 1
    %2424 = vsyncpa [#allocation4], 1
    %s2425 = scalar_lea.sflag [#allocation4], 1
    %2426 = vsyncpa %s2425, 1

</llo_original>
